<compile_context>
chip_gen: v7x
topology: tpu7x:2x2x1
jax: 0.10.0
libtpu: 0.0.40
codegen_flags: <defaults>
</compile_context>

<pallas_src>
import functools

import jax
import jax.numpy as jnp
import numpy as np
from jax.experimental import pallas as pl
from jax.experimental.pallas import tpu as pltpu


# ----------------------------------------------------------------------------
# Generation-aware VMEM budgeting
# ----------------------------------------------------------------------------
def _detect_vmem_capacity():
    try:
        info = pltpu.get_tpu_info()
        cap = getattr(info, "vmem_capacity_bytes", None)
        if cap:
            return int(cap)
    except Exception:
        pass
    return 64 * 1024 * 1024   # conservative default == v7x per-TC VMEM


_VMEM_CAP = _detect_vmem_capacity()
# Scoped limit handed to Mosaic: ~35 MiB on v7x (64 MiB physical, leave room
# for internal scratch / dot temporaries), ~70 MiB on v5e/v6e (128 MiB).
_MM_VMEM_LIMIT = min(int(_VMEM_CAP * 0.55), 96 * 1024 * 1024)
# Fraction of the scoped limit the double-buffered tile working set may use.
_TILE_BUDGET = int(_MM_VMEM_LIMIT * 0.7)


def _round_up(x, m):
    return (x + m - 1) // m * m


# ----------------------------------------------------------------------------
# Matmul tile selection (VMEM-budget aware, megacore aware, bf16-aligned)
# ----------------------------------------------------------------------------
_TM_PREFS = (1024, 896, 768, 640, 512, 448, 384, 320, 256, 192, 128, 64, 32, 16)
_TN_PREFS = (512, 256, 128)


def _divisor_cands(dim, prefs):
    c = [t for t in prefs if t <= dim and dim % t == 0]
    return c if c else [dim]            # full-dim block is always allowed


def _tile_bytes(tm, tn, K, has_residual, out_itemsize):
    b = 2 * 2 * (tm * K + K * tn)        # bf16 LHS/RHS, double buffered
    b += 2 * 4 * tn                      # f32 bias row, double buffered
    b += 2 * out_itemsize * tm * tn      # output tile, double buffered
    b += 4 * tm * tn                     # f32 dot accumulator temporaries
    if has_residual:
        b += 2 * 2 * tm * tn             # bf16 residual tile, double buffered
    return b


def _select_tiles(Mp, N, K, has_residual, out_itemsize):
    tm_c = _divisor_cands(Mp, _TM_PREFS)
    tn_c = _divisor_cands(N, _TN_PREFS)
    tm, tn = tm_c[-1], tn_c[-1]          # smallest candidates as fallback
    found = False
    for cand_tm in tm_c:                 # prefer largest M tile (fewer steps)
        if found:
            break
        for cand_tn in tn_c:             # then largest N tile that still fits
            if _tile_bytes(cand_tm, cand_tn, K, has_residual,
                           out_itemsize) <= _TILE_BUDGET:
                tm, tn = cand_tm, cand_tn
                found = True
                break
    # v7x has 2 TensorCores sharded over "parallel" grid axes: a 1x1 grid
    # leaves one TC idle.  Split tn first (each TC then streams half of the
    # weights on the weight-HBM-bound late layers); ~free on 1-TC chips.
    if (Mp // tm) * (N // tn) < 2:
        smaller_tn = [t for t in tn_c if t < tn]
        smaller_tm = [t for t in tm_c if t < tm]
        if smaller_tn:
            tn = max(smaller_tn)
        elif smaller_tm:
            tm = max(smaller_tm)
    return tm, tn


# ----------------------------------------------------------------------------
# Pallas kernels
# ----------------------------------------------------------------------------
def _mm_bias_kernel(x_ref, w_ref, b_ref, o_ref, *, relu):
    """Single-shot (full-K) matmul + folded-BN bias + optional ReLU."""
    acc = jnp.dot(x_ref[...], w_ref[...], preferred_element_type=jnp.float32)
    r = acc + b_ref[...]
    if relu:
        r = jnp.maximum(r, 0.0)
    o_ref[...] = r.astype(o_ref.dtype)


def _mm_bias_res_relu_kernel(x_ref, w_ref, b_ref, id_ref, o_ref):
    """Matmul + bias + fused residual add + ReLU (bottleneck conv3 epilogue)."""
    acc = jnp.dot(x_ref[...], w_ref[...], preferred_element_type=jnp.float32)
    r = acc + b_ref[...] + id_ref[...].astype(jnp.float32)
    o_ref[...] = jnp.maximum(r, 0.0).astype(o_ref.dtype)


def matmul_bias(x, w, b, relu, residual=None, out_dtype=jnp.bfloat16):
    """(M,K)@(K,N) + b [+ residual] [+ ReLU]; bf16 MXU inputs, f32 accumulate."""
    M, K = x.shape
    N = w.shape[1]

    # Ragged K (only the 7x7 stem conv, K = 147): pad only to the bf16 sublane
    # packing (16), not to 128 -- avoids a large zero-column slab in HBM.
    if K % 16 != 0:
        Kp = _round_up(K, 16)
        x = jnp.pad(x, ((0, 0), (0, Kp - K)))
        w = jnp.pad(w, ((0, Kp - K), (0, 0)))
        K = Kp

    # bf16 packs (16, 128) per vreg -> align M to 16 (never pad M to 128).
    Mp = _round_up(M, 16)
    if Mp != M:
        x = jnp.pad(x, ((0, Mp - M), (0, 0)))
        if residual is not None:
            residual = jnp.pad(residual, ((0, Mp - M), (0, 0)))

    tm, tn = _select_tiles(Mp, N, K, residual is not None,
                           jnp.dtype(out_dtype).itemsize)
    # K stays fully resident per tile (max K in ResNet-50 = 4608 -> bf16 tiles
    # of a few MiB), so there is no K grid axis and no accumulator scratch.

    b2 = b.astype(jnp.float32).reshape(1, N)

    in_specs = [
        pl.BlockSpec((tm, K), lambda i, j: (i, 0)),
        pl.BlockSpec((K, tn), lambda i, j: (0, j)),
        pl.BlockSpec((1, tn), lambda i, j: (0, j)),
    ]
    args = [x, w, b2]
    if residual is not None:
        in_specs.append(pl.BlockSpec((tm, tn), lambda i, j: (i, j)))
        args.append(residual)
        kernel = _mm_bias_res_relu_kernel
    else:
        kernel = functools.partial(_mm_bias_kernel, relu=relu)

    out = pl.pallas_call(
        kernel,
        out_shape=jax.ShapeDtypeStruct((Mp, N), out_dtype),
        grid=(Mp // tm, N // tn),
        in_specs=in_specs,
        out_specs=pl.BlockSpec((tm, tn), lambda i, j: (i, j)),
        compiler_params=pltpu.CompilerParams(
            dimension_semantics=("parallel", "parallel"),
            vmem_limit_bytes=_MM_VMEM_LIMIT),
    )(*args)
    return out[:M] if Mp != M else out


def _make_reduce_kernel(nslabs, op):
    def kernel(*refs):
        o_ref = refs[nslabs]
        v = refs[0][...].astype(jnp.float32)
        for idx in range(1, nslabs):
            r = refs[idx][...].astype(jnp.float32)
            v = jnp.maximum(v, r) if op == "max" else v + r
        if op == "avg":
            v = v * (1.0 / nslabs)
        o_ref[...] = v.astype(o_ref.dtype)
    return kernel


def _pick_rows(M, C, nbufs, itemsize):
    budget = max(64 * 1024, _TILE_BUDGET // (2 * nbufs))
    max_rows = max(8, budget // max(1, C * itemsize))
    for t in (8192, 4096, 2048, 1024, 512, 256, 128, 64, 32, 16, 8):
        if t <= max_rows and M % t == 0:
            return t
    return M


def window_reduce(slabs, op):
    """Elementwise max/avg over a list of (M, C) slabs (one per window tap)."""
    M, C = slabs[0].shape
    dtype = slabs[0].dtype
    n = len(slabs)

    # Lane-densify: C < 128 (stem maxpool, C=64) would emit masked half-width
    # vld/vst and leave half the VPU lanes idle.  Fold rows into lanes (free,
    # contiguous reshape) so every load/store is unmasked.
    g = 1
    if C % 128 != 0:
        for cand in (16, 8, 4, 2):
            if M % (cand * 8) == 0 and (C * cand) % 128 == 0:
                g = cand
                break
    if g > 1:
        slabs = [s.reshape(M // g, C * g) for s in slabs]
    Mr, Cr = slabs[0].shape

    tm = _pick_rows(Mr, Cr, n + 1, jnp.dtype(dtype).itemsize)
    spec = pl.BlockSpec((tm, Cr), lambda m: (m, 0))
    out = pl.pallas_call(
        _make_reduce_kernel(n, op),
        out_shape=jax.ShapeDtypeStruct((Mr, Cr), dtype),
        grid=(Mr // tm,),
        in_specs=[spec] * n,
        out_specs=spec,
        compiler_params=pltpu.CompilerParams(
            dimension_semantics=("parallel",),
            vmem_limit_bytes=_MM_VMEM_LIMIT),
    )(*slabs)
    return out.reshape(M, C) if g > 1 else out


# ----------------------------------------------------------------------------
# Conv / pooling built on top of the kernels
# ----------------------------------------------------------------------------
def _extract_patches(x, kh, kw, stride, pad, pad_value=0.0):
    """x:(B,H,W,C) -> (B*OH*OW, kh*kw*C) patches, row-major over (kh,kw,C)."""
    # TODO(synk): fuse this im2col into the matmul (memory_space=pl.ANY +
    # per-row-block manual make_async_copy, per-tap accumulation) to remove the
    # ~9x activation-slab HBM traffic of the 3x3/7x7 convs.
    B, H, W, C = x.shape
    xp = jnp.pad(x, ((0, 0), (pad, pad), (pad, pad), (0, 0)),
                 constant_values=pad_value)
    OH = (H + 2 * pad - kh) // stride + 1
    OW = (W + 2 * pad - kw) // stride + 1
    cols = []
    for i in range(kh):
        for j in range(kw):
            cols.append(xp[:, i:i + stride * (OH - 1) + 1:stride,
                           j:j + stride * (OW - 1) + 1:stride, :])
    patches = jnp.concatenate(cols, axis=-1)
    return patches.reshape(B * OH * OW, kh * kw * C), OH, OW


def conv_bn_act(x, p, stride, pad, relu, residual=None):
    """Conv (HWIO weights) + folded eval-mode BN + optional fused residual+ReLU."""
    kh, kw, cin, cout = p["w"].shape
    B = x.shape[0]
    w2 = (p["w"] * p["scale"][None, None, None, :]).reshape(kh * kw * cin, cout)
    w2 = w2.astype(jnp.bfloat16)
    if kh == 1 and kw == 1 and pad == 0:
        # 1x1 conv: no im2col -- just a (strided) channel-last reshape.
        # TODO(synk): fold the stride-2 subsample into the Pallas DMA (strided
        # copy / even-row index_map) instead of this XLA-level materialization.
        xs = x[:, ::stride, ::stride, :] if stride > 1 else x
        _, OH, OW, _ = xs.shape
        patches = xs.reshape(B * OH * OW, cin)
    else:
        patches, OH, OW = _extract_patches(x, kh, kw, stride, pad)
    res2d = None if residual is None else residual.reshape(B * OH * OW, cout)
    out = matmul_bias(patches.astype(jnp.bfloat16), w2, p["bias"], relu,
                      residual=res2d)
    return out.reshape(B, OH, OW, cout)


def maxpool_3x3_s2(x):
    """Stem max-pool: kernel 3, stride 2, pad 1 (NHWC)."""
    # TODO(synk): pass 3 row-tap slabs at full padded width and do the column
    # taps in-kernel (strided reads / roll) to cut slab HBM traffic ~3x.
    B, H, W, C = x.shape
    xp = jnp.pad(x, ((0, 0), (1, 1), (1, 1), (0, 0)),
                 constant_values=-jnp.inf)
    OH = (H + 2 - 3) // 2 + 1
    OW = (W + 2 - 3) // 2 + 1
    slabs = [xp[:, i:i + 2 * (OH - 1) + 1:2,
                j:j + 2 * (OW - 1) + 1:2, :].reshape(B * OH * OW, C)
             for i in range(3) for j in range(3)]
    out = window_reduce(slabs, "max")
    return out.reshape(B, OH, OW, C)


def adaptive_pool_half(x, pool_type):
    """Adaptive max/avg pool to (H//2, W//2); for even H,W this is 2x2/s2."""
    B, H, W, C = x.shape
    assert H % 2 == 0 and W % 2 == 0, "even spatial dims expected here"
    OH, OW = H // 2, W // 2
    slabs = [x[:, i::2, j::2, :].reshape(B * OH * OW, C)
             for i in range(2) for j in range(2)]
    out = window_reduce(slabs, "max" if pool_type == "max" else "avg")
    return out.reshape(B, OH, OW, C)


# ----------------------------------------------------------------------------
# ResNet-50 backbone (torchvision layout, eval-mode BN folded)
# ----------------------------------------------------------------------------
def _conv_param(key, kh, kw, cin, cout):
    w = jax.random.normal(key, (kh, kw, cin, cout), jnp.float32)
    w = w * np.sqrt(2.0 / (kh * kw * cin))
    eps = 1e-5
    # BN eval params: gamma=1, beta=0, running_mean=0, running_var=1, folded.
    scale = jnp.full((cout,), 1.0 / np.sqrt(1.0 + eps), jnp.float32)
    bias = jnp.zeros((cout,), jnp.float32)
    return {"w": w, "scale": scale, "bias": bias}


def make_resnet50_params(key):
    keys = iter(jax.random.split(key, 256))
    params = {"conv1": _conv_param(next(keys), 7, 7, 3, 64), "layers": []}
    in_c = 64
    for planes, nblocks, stride in [(64, 3, 1), (128, 4, 2),
                                    (256, 6, 2), (512, 3, 2)]:
        blocks = []
        for b in range(nblocks):
            s = stride if b == 0 else 1
            blk = {
                "stride": s,
                "conv1": _conv_param(next(keys), 1, 1, in_c, planes),
                "conv2": _conv_param(next(keys), 3, 3, planes, planes),
                "conv3": _conv_param(next(keys), 1, 1, planes, planes * 4),
            }
            if s != 1 or in_c != planes * 4:
                blk["down"] = _conv_param(next(keys), 1, 1, in_c, planes * 4)
            blocks.append(blk)
            in_c = planes * 4
        params["layers"].append(blocks)
    return params


def bottleneck(x, blk):
    # TODO(synk): for the small-M late stages, fuse conv1->conv2->conv3+residual
    # into a single pallas_call (activations resident in VMEM, weights streamed)
    # to remove per-call launch overhead and HBM round-trips.
    # TODO(synk): optional fp8 (v7x) / int8 (v5e/v6e) weight quantization for
    # the weight-HBM-bound late layers.
    s = blk["stride"]
    out = conv_bn_act(x, blk["conv1"], stride=1, pad=0, relu=True)
    out = conv_bn_act(out, blk["conv2"], stride=s, pad=1, relu=True)
    if "down" in blk:
        identity = conv_bn_act(x, blk["down"], stride=s, pad=0, relu=False)
    else:
        identity = x
    # conv3 + BN + residual add + ReLU fused in a single matmul epilogue.
    # (Residual is carried in bf16 -- deliberate bf16-inference difference from
    # the fp32 PyTorch reference.)
    return conv_bn_act(out, blk["conv3"], stride=1, pad=0, relu=True,
                       residual=identity)


def resnet50_features(x_nhwc, params):
    x = conv_bn_act(x_nhwc, params["conv1"], stride=2, pad=3, relu=True)
    x = maxpool_3x3_s2(x)
    for blocks in params["layers"]:
        for blk in blocks:
            x = bottleneck(x, blk)
    return x  # (B, H/32, W/32, 2048) bf16


# ----------------------------------------------------------------------------
# ImageEncoder_pool forward
# ----------------------------------------------------------------------------
def image_encoder_pool_forward(x_nchw, params, pool_type, num_image_embeds,
                               sample_key):
    # NCHW (PyTorch) -> NHWC (kernel layout)
    x = jnp.transpose(x_nchw, (0, 2, 3, 1)).astype(jnp.float32)
    feat = resnet50_features(x, params)             # (B, h, w, 2048)
    B, h, w, C = feat.shape
    W_, H_ = h // 2, w // 2                          # int(model_out/2)
    pooled = adaptive_pool_half(feat, pool_type)     # (B, W_, H_, 2048)
    # flatten(start_dim=2).transpose(1, 2)  ==  (B, W_*H_, 2048) in NHWC
    seq = pooled.reshape(B, W_ * H_, C)
    # torch.randperm(...)[:k] then sort; PRNG stream differs from torch.
    perm = jax.random.permutation(sample_key, W_ * H_)[:num_image_embeds]
    idx = jnp.sort(perm)
    return seq[:, idx, :].astype(jnp.float32)        # (B, num_image_embeds, 2048)


# ----------------------------------------------------------------------------
if __name__ == "__main__":
    key = jax.random.PRNGKey(0)
    k_params, k_x, k_sample = jax.random.split(key, 3)

    params = make_resnet50_params(k_params)

    # Small but ResNet-compatible input: /32 downsample -> 4x4 feature map,
    # adaptive pool -> 2x2 -> 4 positions, sample 3 of them.
    B, num_image_embeds = 2, 3
    x = jax.random.normal(k_x, (B, 3, 128, 128), jnp.float32)

    out = image_encoder_pool_forward(x, params, pool_type="max",
                                     num_image_embeds=num_image_embeds,
                                     sample_key=k_sample)
    out = jax.block_until_ready(out)
    assert out.shape == (B, num_image_embeds, 2048), out.shape
    assert bool(jnp.all(jnp.isfinite(out)))
    print("KERNEL_OK")
</pallas_src>

<mosaic_0001>
module attributes {stable_mosaic.version = 11 : i64} {
  func.func @_mm_bias_kernel(%arg0: i32, %arg1: i32, %arg2: memref<1024x160xbf16, #tpu.memory_space<vmem>>, %arg3: memref<160x64xbf16, #tpu.memory_space<vmem>>, %arg4: memref<1x64xf32, #tpu.memory_space<vmem>>, %arg5: memref<1024x64xbf16, #tpu.memory_space<vmem>>) attributes {dimension_semantics = [#tpu.dimension_semantics<parallel>, #tpu.dimension_semantics<parallel>], iteration_bounds = array<i64: 8, 1>, scalar_prefetch = 0 : i64, scratch_operands = 0 : i64, tpu.core_type = #tpu.core_type<tc>, window_params = [{transform_indices = @transform_0, window_bounds = array<i64: 1024, 160>}, {transform_indices = @transform_1, window_bounds = array<i64: 160, 64>}, {transform_indices = @transform_2, window_bounds = array<i64: 1, 64>}, {transform_indices = @transform_3, window_bounds = array<i64: 1024, 64>}]} {
    %c0 = arith.constant 0 : index
    %c0_0 = arith.constant 0 : index
    %0 = vector.load %arg2[%c0, %c0_0] : memref<1024x160xbf16, #tpu.memory_space<vmem>>, vector<1024x160xbf16>
    %c0_1 = arith.constant 0 : index
    %c0_2 = arith.constant 0 : index
    %1 = vector.load %arg3[%c0_1, %c0_2] : memref<160x64xbf16, #tpu.memory_space<vmem>>, vector<160x64xbf16>
    %cst = arith.constant dense<0.000000e+00> : vector<1024x64xf32>
    %2 = tpu.matmul %0, %1, %cst {dimension_numbers = #tpu.dot_dimension_numbers<[1], [0], [0], [1], [0, 0, 1, 1], [], []>} : vector<1024x160xbf16>, vector<160x64xbf16>, vector<1024x64xf32> -> vector<1024x64xf32>
    %c0_3 = arith.constant 0 : index
    %c0_4 = arith.constant 0 : index
    %3 = vector.load %arg4[%c0_3, %c0_4] : memref<1x64xf32, #tpu.memory_space<vmem>>, vector<1x64xf32>
    %4 = vector.broadcast %3 : vector<1x64xf32> to vector<1024x64xf32>
    %5 = arith.addf %2, %4 : vector<1024x64xf32>
    %cst_5 = arith.constant 0.000000e+00 : f32
    %6 = vector.broadcast %cst_5 : f32 to vector<1024x64xf32>
    %7 = arith.maximumf %5, %6 : vector<1024x64xf32>
    %8 = arith.truncf %7 : vector<1024x64xf32> to vector<1024x64xbf16>
    %c0_6 = arith.constant 0 : index
    %c0_7 = arith.constant 0 : index
    %9 = vector.load %arg5[%c0_6, %c0_7] : memref<1024x64xbf16, #tpu.memory_space<vmem>>, vector<1024x64xbf16>
    tpu.vector_store %arg5[%c0_6, %c0_7], %8 {strides = array<i32>} : memref<1024x64xbf16, #tpu.memory_space<vmem>>, vector<1024x64xbf16>,
    return
  }
  func.func @transform_0(%arg0: i32, %arg1: i32) -> (i32, i32) {
    %c0_i32 = arith.constant 0 : i32
    %c0_i32_0 = arith.constant 0 : i32
    return %arg0, %c0_i32 : i32, i32
  }
  func.func @transform_1(%arg0: i32, %arg1: i32) -> (i32, i32) {
    %c0_i32 = arith.constant 0 : i32
    %c0_i32_0 = arith.constant 0 : i32
    return %c0_i32, %arg1 : i32, i32
  }
  func.func @transform_2(%arg0: i32, %arg1: i32) -> (i32, i32) {
    %c0_i32 = arith.constant 0 : i32
    %c0_i32_0 = arith.constant 0 : i32
    return %c0_i32, %arg1 : i32, i32
  }
  func.func @transform_3(%arg0: i32, %arg1: i32) -> (i32, i32) {
    %c0_i32 = arith.constant 0 : i32
    return %arg0, %arg1 : i32, i32
  }
}

</mosaic_0001>

<llo_original>
// kernel: tpu_custom_call.1
$region0: #{tpu_custom_call.1}
  #allocation0 [shape = 'u32[]', space=smem, size = 0x4, offset = 0x4, fixed_abs, tag = 'smem constant byte address 0x4 - core index']
  #allocation1 [shape = 'u32[144,128]{1,0:T(1,128)}', space=vmem, size = 0x12000, scoped, tag = 'internal scratch']
  %s0 = inlined_call_operand.vmem [shape: bf16[8192,160], index: 0, kind: input, shape index: {}]
  %s1 = inlined_call_operand.vmem [shape: bf16[160,64], index: 1, kind: input, shape index: {}]
  %s2 = inlined_call_operand.vmem [shape: f32[1,64], index: 2, kind: input, shape index: {}]
  %s3 = inlined_call_operand.vmem [shape: bf16[8192,64], index: 3, kind: output, shape index: {}]
  %s4 = sld [smem:[#allocation0]]
  $region45: #{tpu_custom_call.1} parent=0
    _
  %s6 = ssub.s32 1, %s4
  %s7 = scalar_select 0, %s6, %s4
  loop: start=0, step=1, limit=10
  $region2: #{tpu_custom_call.1} parent=0 // loop_pre_header
    _
  $region3: #{tpu_custom_call.1} parent=0 // loop_header
    %s9 = sphi 0, %s13
    %p10 = scmp.ge.s32.totalorder %s9, 10
    %s16 = sphi 0, %s28
    %s17 = sphi 0, %s24
    %s18 = sphi 0, %s16
    %s19 = sphi 0, %s17
    %s20 = sphi 0, %s18
    %s21 = sphi 0, %s19
    %s31 = sphi 0, %s33
    %s34 = sphi 0, %s31
    %s35 = sphi 0, %s34
    %s51 = sphi 0, %s35
    %s57 = sphi 0, %s59
    %s60 = sphi 0, %s57
    %s61 = sphi 0, %s60
    %s77 = sphi 0, %s61
    %s83 = sphi 0, %s85
    %s86 = sphi 0, %s83
    %s87 = sphi 0, %s86
    %s103 = sphi 0, %s87
    %s111 = sphi 0, %s113
    %s114 = sphi 0, %s111
    %s115 = sphi 0, %s114
    %s131 = sphi 0, %s115
  $region4: #{tpu_custom_call.1} parent=0 // loop_header_branch
    %12 = sbr.rel (%p10) target = $region8
  $region5: #{tpu_custom_call.1} parent=0 // loop_body
    %s14 = ssub.s32 %s9, 1
    %s15 = ssub.s32 %s9, 2
    %s22 = sadd.s32 1, %s17
    %p23 = scmp.ge.s32.totalorder %s22, 1
    %s24 = scalar_select %p23, 0, %s22
    %s25 = sadd.s32 1, %s16
    %s26 = scalar_select %p23, %s25, %s16
    %p27 = scmp.ge.s32.totalorder %s26, 8
    %s28 = scalar_select %p27, 0, %s26
    %s29 = ssub.s32 %s16, %s28
    %p30 = scmp.eq.s32.totalorder %s29, 0
    %s32 = sadd.s32 %s31, 1
    %s33 = scalar_select %p30, %s31, %s32
    %p36 = pneg %p30
    %p37 = scmp.eq.s32.totalorder %s9, 7
    %p38 = por %p36, %p37
    %p39 = scmp.ne.s32.totalorder %s31, %s34
    %p40 = scmp.eq.s32.totalorder %s9, 0
    %p41 = por %p39, %p40
    %p42 = scmp.ne.s32.totalorder %s31, %s34
    %p43 = scmp.eq.s32.totalorder %s14, 7
    %p44 = por %p42, %p43
    %p45 = scmp.ne.s32.totalorder %s34, %s35
    %p46 = scmp.eq.s32.totalorder %s14, 0
    %p47 = por %p45, %p46
    %p48 = scmp.ne.s32.totalorder %s34, %s35
    %p49 = scmp.eq.s32.totalorder %s15, 7
    %p50 = por %p48, %p49
    %p52 = scmp.ne.s32.totalorder %s35, %s51
    %p53 = scmp.eq.s32.totalorder %s15, 0
    %p54 = por %p52, %p53
    %s55 = ssub.s32 %s17, %s24
    %p56 = scmp.eq.s32.totalorder %s55, 0
    %s58 = sadd.s32 %s57, 1
    %s59 = scalar_select %p56, %s57, %s58
    %p62 = pneg %p56
    %p63 = scmp.eq.s32.totalorder %s9, 7
    %p64 = por %p62, %p63
    %p65 = scmp.ne.s32.totalorder %s57, %s60
    %p66 = scmp.eq.s32.totalorder %s9, 0
    %p67 = por %p65, %p66
    %p68 = scmp.ne.s32.totalorder %s57, %s60
    %p69 = scmp.eq.s32.totalorder %s14, 7
    %p70 = por %p68, %p69
    %p71 = scmp.ne.s32.totalorder %s60, %s61
    %p72 = scmp.eq.s32.totalorder %s14, 0
    %p73 = por %p71, %p72
    %p74 = scmp.ne.s32.totalorder %s60, %s61
    %p75 = scmp.eq.s32.totalorder %s15, 7
    %p76 = por %p74, %p75
    %p78 = scmp.ne.s32.totalorder %s61, %s77
    %p79 = scmp.eq.s32.totalorder %s15, 0
    %p80 = por %p78, %p79
    %s81 = ssub.s32 %s17, %s24
    %p82 = scmp.eq.s32.totalorder %s81, 0
    %s84 = sadd.s32 %s83, 1
    %s85 = scalar_select %p82, %s83, %s84
    %p88 = pneg %p82
    %p89 = scmp.eq.s32.totalorder %s9, 7
    %p90 = por %p88, %p89
    %p91 = scmp.ne.s32.totalorder %s83, %s86
    %p92 = scmp.eq.s32.totalorder %s9, 0
    %p93 = por %p91, %p92
    %p94 = scmp.ne.s32.totalorder %s83, %s86
    %p95 = scmp.eq.s32.totalorder %s14, 7
    %p96 = por %p94, %p95
    %p97 = scmp.ne.s32.totalorder %s86, %s87
    %p98 = scmp.eq.s32.totalorder %s14, 0
    %p99 = por %p97, %p98
    %p100 = scmp.ne.s32.totalorder %s86, %s87
    %p101 = scmp.eq.s32.totalorder %s15, 7
    %p102 = por %p100, %p101
    %p104 = scmp.ne.s32.totalorder %s87, %s103
    %p105 = scmp.eq.s32.totalorder %s15, 0
    %p106 = por %p104, %p105
    %s107 = ssub.s32 %s16, %s28
    %s108 = ssub.s32 %s17, %s24
    %s109 = sor.u32 %s107, %s108
    %p110 = scmp.eq.s32.totalorder %s109, 0
    %s112 = sadd.s32 %s111, 1
    %s113 = scalar_select %p110, %s111, %s112
    %p116 = pneg %p110
    %p117 = scmp.eq.s32.totalorder %s9, 7
    %p118 = por %p116, %p117
    %p119 = scmp.ne.s32.totalorder %s111, %s114
    %p120 = scmp.eq.s32.totalorder %s9, 0
    %p121 = por %p119, %p120
    %p122 = scmp.ne.s32.totalorder %s111, %s114
    %p123 = scmp.eq.s32.totalorder %s14, 7
    %p124 = por %p122, %p123
    %p125 = scmp.ne.s32.totalorder %s114, %s115
    %p126 = scmp.eq.s32.totalorder %s14, 0
    %p127 = por %p125, %p126
    %p128 = scmp.ne.s32.totalorder %s114, %s115
    %p129 = scmp.eq.s32.totalorder %s15, 7
    %p130 = por %p128, %p129
    %p132 = scmp.ne.s32.totalorder %s115, %s131
    %p133 = scmp.eq.s32.totalorder %s15, 0
    %p134 = por %p132, %p133
    %p135 = scmp.le.s32.totalorder 1, %s9
    %p136 = scmp.lt.s32.totalorder %s9, 9
    %p137 = pnand %p135, %p136
    %p138 = pneg %p137
    // Predicated region
    $region9: #{tpu_custom_call.1} parent=5 // pred_check
      _
    $region10: #{tpu_custom_call.1} parent=5 // pred_check_branch
      %140 = sbr.rel (%p137) target = $region12
    $region11: #{tpu_custom_call.1} parent=5 // pred_region
      %s141 = ssub.s32 %s9, 1
      // Predicated region
      $region13: #{tpu_custom_call.1} parent=11 // pred_check
        %p142 = pneg %p73
      $region14: #{tpu_custom_call.1} parent=11 // pred_check_branch
        %144 = sbr.rel (%p142) target = $region16
      $region15: #{tpu_custom_call.1} parent=11 // pred_region
        %p145 = scmp.lt.s32.totalorder %s19, 0
        %s146 = scalar_select %p145, %s19, 0
        %s147 = smul.addr %s146, 4
        %s148 = scalar_lea.vmem %s1, %s147
      $region16: #{tpu_custom_call.1} parent=11 // pred_fallthru
        _
      // Predicated region
      $region17: #{tpu_custom_call.1} parent=11 // pred_check
        %p149 = pneg %p99
      $region18: #{tpu_custom_call.1} parent=11 // pred_check_branch
        %151 = sbr.rel (%p149) target = $region20
      $region19: #{tpu_custom_call.1} parent=11 // pred_region
        %p152 = scmp.lt.s32.totalorder %s19, 0
        %s153 = scalar_select %p152, %s19, 0
        %s154 = scalar_lea.vmem %s2, %s153
      $region20: #{tpu_custom_call.1} parent=11 // pred_fallthru
        _
    $region12: #{tpu_custom_call.1} parent=5 // pred_fallthru
      _
    %p155 = scmp.lt.s32.totalorder %s9, 8
    // Predicated region
    $region21: #{tpu_custom_call.1} parent=5 // pred_check
      %p156 = pneg %p155
    $region22: #{tpu_custom_call.1} parent=5 // pred_check_branch
      %158 = sbr.rel (%p156) target = $region24
    $region23: #{tpu_custom_call.1} parent=5 // pred_region
      // Predicated region
      $region25: #{tpu_custom_call.1} parent=23 // pred_check
        %p159 = pneg %p41
      $region26: #{tpu_custom_call.1} parent=23 // pred_check_branch
        %161 = sbr.rel (%p159) target = $region28
      $region27: #{tpu_custom_call.1} parent=23 // pred_region
        %s162 = smul.u32 128, %s16
        %p163 = scmp.lt.s32.totalorder %s162, 1023
        %s164 = scalar_select %p163, %s162, 1023
        %s165 = smul.addr %s164, 2
        %s166 = smul.addr %s165, 4
        %s167 = scalar_lea.vmem %s0, %s166
        %s168 = smul.u32 128, %s16
      $region28: #{tpu_custom_call.1} parent=23 // pred_fallthru
        _
    $region24: #{tpu_custom_call.1} parent=5 // pred_fallthru
      _
    %p169 = scmp.le.s32.totalorder 1, %s9
    %p170 = scmp.lt.s32.totalorder %s9, 9
    %p171 = pnand %p169, %p170
    %p172 = pneg %p171
    // Predicated region
    $region29: #{tpu_custom_call.1} parent=5 // pred_check
      _
    $region30: #{tpu_custom_call.1} parent=5 // pred_check_branch
      %174 = sbr.rel (%p171) target = $region32
    $region31: #{tpu_custom_call.1} parent=5 // pred_region
      %s175 = ssub.s32 %s9, 1
      %s176 = smul.u32 128, %s18
      %p177 = scmp.lt.s32.totalorder %s176, 1023
      %s178 = scalar_select %p177, %s176, 1023
      %s179 = smul.addr %s178, 2
      %s180 = smul.addr %s179, 4
      %s181 = scalar_lea.vmem %s0, %s180
      %p182 = pneg %p47
      %p183 = pneg %p44
      %p184 = scmp.lt.s32.totalorder %s19, 0
      %s185 = scalar_select %p184, %s19, 0
      %s186 = smul.addr %s185, 4
      %s187 = scalar_lea.vmem %s1, %s186
      %p188 = pneg %p73
      %p189 = pneg %p70
      %p190 = scmp.lt.s32.totalorder %s19, 0
      %s191 = scalar_select %p190, %s19, 0
      %s192 = scalar_lea.vmem %s2, %s191
      %p193 = pneg %p99
      %p194 = pneg %p96
      %p195 = pneg %p127
      %p196 = pneg %p124
      %s197 = smul.u32 128, %s18
      %p198 = scmp.lt.s32.totalorder %s197, 1023
      %s199 = scalar_select %p198, %s197, 1023
      %p200 = scmp.lt.s32.totalorder %s19, 0
      %s201 = scalar_select %p200, %s19, 0
      %s202 = sadd.s32 %s201, %s199
      %s203 = smul.addr %s202, 4
      %s204 = scalar_lea.vmem %s3, %s203
      %s205 = smul.u32 128, %s18
      %p206 = scmp.lt.s32.totalorder %s205, 1023
      %s207 = scalar_select %p206, %s205, 1023
      %s208 = smul.addr %s207, 2
      %s209 = smul.addr %s208, 4
      %s210 = scalar_lea.vmem %s0, %s209
      %s211 = smul.u32 128, %s18
      %p212 = scmp.lt.s32.totalorder %s19, 0
      %s213 = scalar_select %p212, %s19, 0
      %s214 = smul.addr %s213, 4
      %s215 = scalar_lea.vmem %s1, %s214
      %p216 = scmp.lt.s32.totalorder %s19, 0
      %s217 = scalar_select %p216, %s19, 0
      %s218 = scalar_lea.vmem %s2, %s217
      %s219 = smul.u32 128, %s18
      %p220 = scmp.lt.s32.totalorder %s219, 1023
      %s221 = scalar_select %p220, %s219, 1023
      %p222 = scmp.lt.s32.totalorder %s19, 0
      %s223 = scalar_select %p222, %s19, 0
      %s224 = sadd.s32 %s223, %s221
      %s225 = smul.addr %s224, 4
      %s226 = scalar_lea.vmem %s3, %s225
      %s227 = smul.u32 128, %s18
      %v229 = vld [vmem:[%s210] sm:$0xff]
      %v230 = vld [vmem:[%s210 + $0x8] sm:$0xff]
      %v231 = vld [vmem:[%s210 + $0x10] sm:$0xff]
      %v232 = vld [vmem:[%s210 + $0x18] sm:$0xff]
      %v233 = vld [vmem:[%s210 + $0x20] sm:$0xff]
      %v234 = vld [vmem:[%s210 + $0x28] sm:$0xff]
      %v235 = vld [vmem:[%s210 + $0x30] sm:$0xff]
      %v236 = vld [vmem:[%s210 + $0x38] sm:$0xff]
      %v237 = vld [vmem:[%s210 + $0x40] sm:$0xff]
      %v238 = vld [vmem:[%s210 + $0x48] sm:$0xff]
      %v239 = vld [vmem:[%s210 + $0x50] sm:$0xff]
      %v240 = vld [vmem:[%s210 + $0x58] sm:$0xff]
      %v241 = vld [vmem:[%s210 + $0x60] sm:$0xff]
      %v242 = vld [vmem:[%s210 + $0x68] sm:$0xff]
      %v243 = vld [vmem:[%s210 + $0x70] sm:$0xff]
      %v244 = vld [vmem:[%s210 + $0x78] sm:$0xff]
      %v245 = vld [vmem:[%s210 + $0x80] sm:$0xff]
      %v246 = vld [vmem:[%s210 + $0x88] sm:$0xff]
      %v247 = vld [vmem:[%s210 + $0x90] sm:$0xff]
      %v248 = vld [vmem:[%s210 + $0x98] sm:$0xff]
      %v249 = vld [vmem:[%s210 + $0xa0] sm:$0xff]
      %v250 = vld [vmem:[%s210 + $0xa8] sm:$0xff]
      %v251 = vld [vmem:[%s210 + $0xb0] sm:$0xff]
      %v252 = vld [vmem:[%s210 + $0xb8] sm:$0xff]
      %v253 = vld [vmem:[%s210 + $0xc0] sm:$0xff]
      %v254 = vld [vmem:[%s210 + $0xc8] sm:$0xff]
      %v255 = vld [vmem:[%s210 + $0xd0] sm:$0xff]
      %v256 = vld [vmem:[%s210 + $0xd8] sm:$0xff]
      %v257 = vld [vmem:[%s210 + $0xe0] sm:$0xff]
      %v258 = vld [vmem:[%s210 + $0xe8] sm:$0xff]
      %v259 = vld [vmem:[%s210 + $0xf0] sm:$0xff]
      %v260 = vld [vmem:[%s210 + $0xf8] sm:$0xff]
      %v261 = vld [vmem:[%s210 + $0x100] sm:$0xff]
      %v262 = vld [vmem:[%s210 + $0x108] sm:$0xff]
      %v263 = vld [vmem:[%s210 + $0x110] sm:$0xff]
      %v264 = vld [vmem:[%s210 + $0x118] sm:$0xff]
      %v265 = vld [vmem:[%s210 + $0x120] sm:$0xff]
      %v266 = vld [vmem:[%s210 + $0x128] sm:$0xff]
      %v267 = vld [vmem:[%s210 + $0x130] sm:$0xff]
      %v268 = vld [vmem:[%s210 + $0x138] sm:$0xff]
      %v269 = vld [vmem:[%s210 + $0x140] sm:$0xff]
      %v270 = vld [vmem:[%s210 + $0x148] sm:$0xff]
      %v271 = vld [vmem:[%s210 + $0x150] sm:$0xff]
      %v272 = vld [vmem:[%s210 + $0x158] sm:$0xff]
      %v273 = vld [vmem:[%s210 + $0x160] sm:$0xff]
      %v274 = vld [vmem:[%s210 + $0x168] sm:$0xff]
      %v275 = vld [vmem:[%s210 + $0x170] sm:$0xff]
      %v276 = vld [vmem:[%s210 + $0x178] sm:$0xff]
      %v277 = vld [vmem:[%s210 + $0x180] sm:$0xff]
      %v278 = vld [vmem:[%s210 + $0x188] sm:$0xff]
      %v279 = vld [vmem:[%s210 + $0x190] sm:$0xff]
      %v280 = vld [vmem:[%s210 + $0x198] sm:$0xff]
      %v281 = vld [vmem:[%s210 + $0x1a0] sm:$0xff]
      %v282 = vld [vmem:[%s210 + $0x1a8] sm:$0xff]
      %v283 = vld [vmem:[%s210 + $0x1b0] sm:$0xff]
      %v284 = vld [vmem:[%s210 + $0x1b8] sm:$0xff]
      %v285 = vld [vmem:[%s210 + $0x1c0] sm:$0xff]
      %v286 = vld [vmem:[%s210 + $0x1c8] sm:$0xff]
      %v287 = vld [vmem:[%s210 + $0x1d0] sm:$0xff]
      %v288 = vld [vmem:[%s210 + $0x1d8] sm:$0xff]
      %v289 = vld [vmem:[%s210 + $0x1e0] sm:$0xff]
      %v290 = vld [vmem:[%s210 + $0x1e8] sm:$0xff]
      %v291 = vld [vmem:[%s210 + $0x1f0] sm:$0xff]
      %v292 = vld [vmem:[%s210 + $0x1f8] sm:$0xff]
      %v293 = vld [vmem:[%s210 + $0x200] sm:$0xff]
      %v294 = vld [vmem:[%s210 + $0x208] sm:$0xff]
      %v295 = vld [vmem:[%s210 + $0x210] sm:$0xff]
      %v296 = vld [vmem:[%s210 + $0x218] sm:$0xff]
      %v297 = vld [vmem:[%s210 + $0x220] sm:$0xff]
      %v298 = vld [vmem:[%s210 + $0x228] sm:$0xff]
      %v299 = vld [vmem:[%s210 + $0x230] sm:$0xff]
      %v300 = vld [vmem:[%s210 + $0x238] sm:$0xff]
      %v301 = vld [vmem:[%s210 + $0x240] sm:$0xff]
      %v302 = vld [vmem:[%s210 + $0x248] sm:$0xff]
      %v303 = vld [vmem:[%s210 + $0x250] sm:$0xff]
      %v304 = vld [vmem:[%s210 + $0x258] sm:$0xff]
      %v305 = vld [vmem:[%s210 + $0x260] sm:$0xff]
      %v306 = vld [vmem:[%s210 + $0x268] sm:$0xff]
      %v307 = vld [vmem:[%s210 + $0x270] sm:$0xff]
      %v308 = vld [vmem:[%s210 + $0x278] sm:$0xff]
      %v309 = vld [vmem:[%s210 + $0x280] sm:$0xff]
      %v310 = vld [vmem:[%s210 + $0x288] sm:$0xff]
      %v311 = vld [vmem:[%s210 + $0x290] sm:$0xff]
      %v312 = vld [vmem:[%s210 + $0x298] sm:$0xff]
      %v313 = vld [vmem:[%s210 + $0x2a0] sm:$0xff]
      %v314 = vld [vmem:[%s210 + $0x2a8] sm:$0xff]
      %v315 = vld [vmem:[%s210 + $0x2b0] sm:$0xff]
      %v316 = vld [vmem:[%s210 + $0x2b8] sm:$0xff]
      %v317 = vld [vmem:[%s210 + $0x2c0] sm:$0xff]
      %v318 = vld [vmem:[%s210 + $0x2c8] sm:$0xff]
      %v319 = vld [vmem:[%s210 + $0x2d0] sm:$0xff]
      %v320 = vld [vmem:[%s210 + $0x2d8] sm:$0xff]
      %v321 = vld [vmem:[%s210 + $0x2e0] sm:$0xff]
      %v322 = vld [vmem:[%s210 + $0x2e8] sm:$0xff]
      %v323 = vld [vmem:[%s210 + $0x2f0] sm:$0xff]
      %v324 = vld [vmem:[%s210 + $0x2f8] sm:$0xff]
      %v325 = vld [vmem:[%s210 + $0x300] sm:$0xff]
      %v326 = vld [vmem:[%s210 + $0x308] sm:$0xff]
      %v327 = vld [vmem:[%s210 + $0x310] sm:$0xff]
      %v328 = vld [vmem:[%s210 + $0x318] sm:$0xff]
      %v329 = vld [vmem:[%s210 + $0x320] sm:$0xff]
      %v330 = vld [vmem:[%s210 + $0x328] sm:$0xff]
      %v331 = vld [vmem:[%s210 + $0x330] sm:$0xff]
      %v332 = vld [vmem:[%s210 + $0x338] sm:$0xff]
      %v333 = vld [vmem:[%s210 + $0x340] sm:$0xff]
      %v334 = vld [vmem:[%s210 + $0x348] sm:$0xff]
      %v335 = vld [vmem:[%s210 + $0x350] sm:$0xff]
      %v336 = vld [vmem:[%s210 + $0x358] sm:$0xff]
      %v337 = vld [vmem:[%s210 + $0x360] sm:$0xff]
      %v338 = vld [vmem:[%s210 + $0x368] sm:$0xff]
      %v339 = vld [vmem:[%s210 + $0x370] sm:$0xff]
      %v340 = vld [vmem:[%s210 + $0x378] sm:$0xff]
      %v341 = vld [vmem:[%s210 + $0x380] sm:$0xff]
      %v342 = vld [vmem:[%s210 + $0x388] sm:$0xff]
      %v343 = vld [vmem:[%s210 + $0x390] sm:$0xff]
      %v344 = vld [vmem:[%s210 + $0x398] sm:$0xff]
      %v345 = vld [vmem:[%s210 + $0x3a0] sm:$0xff]
      %v346 = vld [vmem:[%s210 + $0x3a8] sm:$0xff]
      %v347 = vld [vmem:[%s210 + $0x3b0] sm:$0xff]
      %v348 = vld [vmem:[%s210 + $0x3b8] sm:$0xff]
      %v349 = vld [vmem:[%s210 + $0x3c0] sm:$0xff]
      %v350 = vld [vmem:[%s210 + $0x3c8] sm:$0xff]
      %v351 = vld [vmem:[%s210 + $0x3d0] sm:$0xff]
      %v352 = vld [vmem:[%s210 + $0x3d8] sm:$0xff]
      %v353 = vld [vmem:[%s210 + $0x3e0] sm:$0xff]
      %v354 = vld [vmem:[%s210 + $0x3e8] sm:$0xff]
      %v355 = vld [vmem:[%s210 + $0x3f0] sm:$0xff]
      %v356 = vld [vmem:[%s210 + $0x3f8] sm:$0xff]
      %v357 = vld [vmem:[%s215] sm:$0xf]
      %v358 = vld [vmem:[%s215 + $0x4] sm:$0xf]
      %v359 = vld [vmem:[%s215 + $0x8] sm:$0xf]
      %v360 = vld [vmem:[%s215 + $0xc] sm:$0xf]
      %v361 = vld [vmem:[%s215 + $0x10] sm:$0xf]
      %v362 = vld [vmem:[%s215 + $0x14] sm:$0xf]
      %v363 = vld [vmem:[%s215 + $0x18] sm:$0xf]
      %v364 = vld [vmem:[%s215 + $0x1c] sm:$0xf]
      %v365 = vld [vmem:[%s215 + $0x20] sm:$0xf]
      %v366 = vld [vmem:[%s215 + $0x24] sm:$0xf]
      %v367 = vld [vmem:[%s215 + $0x28] sm:$0xf]
      %v368 = vld [vmem:[%s215 + $0x2c] sm:$0xf]
      %v369 = vld [vmem:[%s215 + $0x30] sm:$0xf]
      %v370 = vld [vmem:[%s215 + $0x34] sm:$0xf]
      %v371 = vld [vmem:[%s215 + $0x38] sm:$0xf]
      %v372 = vld [vmem:[%s215 + $0x3c] sm:$0xf]
      %v373 = vld [vmem:[%s215 + $0x40] sm:$0xf]
      %v374 = vld [vmem:[%s215 + $0x44] sm:$0xf]
      %v375 = vld [vmem:[%s215 + $0x48] sm:$0xf]
      %v376 = vld [vmem:[%s215 + $0x4c] sm:$0xf]
      %v377 = vld [vmem:[%s218] sm:$0x1]
      %v379 = vlaneseq
      %v380 = vshrl.u32 %v379, 7
      %v381 = vsub.s32 0, %v380
      %v382 = vrot.slane %v377, %v381
      %v512 = vunpack.c.l.b16 %v229
      %v513 = vunpack.c.h.b16 %v229
      %v514 = vunpack.c.l.b16 %v230
      %v515 = vunpack.c.h.b16 %v230
      %v516 = vunpack.c.l.b16 %v231
      %v517 = vunpack.c.h.b16 %v231
      %v518 = vunpack.c.l.b16 %v232
      %v519 = vunpack.c.h.b16 %v232
      %v520 = vunpack.c.l.b16 %v233
      %v521 = vunpack.c.h.b16 %v233
      %v522 = vunpack.c.l.b16 %v234
      %v523 = vunpack.c.h.b16 %v234
      %v524 = vunpack.c.l.b16 %v235
      %v525 = vunpack.c.h.b16 %v235
      %v526 = vunpack.c.l.b16 %v236
      %v527 = vunpack.c.h.b16 %v236
      %v528 = vunpack.c.l.b16 %v237
      %v529 = vunpack.c.h.b16 %v237
      %v530 = vunpack.c.l.b16 %v238
      %v531 = vunpack.c.h.b16 %v238
      %v532 = vunpack.c.l.b16 %v239
      %v533 = vunpack.c.h.b16 %v239
      %v534 = vunpack.c.l.b16 %v240
      %v535 = vunpack.c.h.b16 %v240
      %v536 = vunpack.c.l.b16 %v241
      %v537 = vunpack.c.h.b16 %v241
      %v538 = vunpack.c.l.b16 %v242
      %v539 = vunpack.c.h.b16 %v242
      %v540 = vunpack.c.l.b16 %v243
      %v541 = vunpack.c.h.b16 %v243
      %v542 = vunpack.c.l.b16 %v244
      %v543 = vunpack.c.h.b16 %v244
      %v544 = vunpack.c.l.b16 %v245
      %v545 = vunpack.c.h.b16 %v245
      %v546 = vunpack.c.l.b16 %v246
      %v547 = vunpack.c.h.b16 %v246
      %v548 = vunpack.c.l.b16 %v247
      %v549 = vunpack.c.h.b16 %v247
      %v550 = vunpack.c.l.b16 %v248
      %v551 = vunpack.c.h.b16 %v248
      %v552 = vunpack.c.l.b16 %v249
      %v553 = vunpack.c.h.b16 %v249
      %v554 = vunpack.c.l.b16 %v250
      %v555 = vunpack.c.h.b16 %v250
      %v556 = vunpack.c.l.b16 %v251
      %v557 = vunpack.c.h.b16 %v251
      %v558 = vunpack.c.l.b16 %v252
      %v559 = vunpack.c.h.b16 %v252
      %v560 = vunpack.c.l.b16 %v253
      %v561 = vunpack.c.h.b16 %v253
      %v562 = vunpack.c.l.b16 %v254
      %v563 = vunpack.c.h.b16 %v254
      %v564 = vunpack.c.l.b16 %v255
      %v565 = vunpack.c.h.b16 %v255
      %v566 = vunpack.c.l.b16 %v256
      %v567 = vunpack.c.h.b16 %v256
      %v568 = vunpack.c.l.b16 %v257
      %v569 = vunpack.c.h.b16 %v257
      %v570 = vunpack.c.l.b16 %v258
      %v571 = vunpack.c.h.b16 %v258
      %v572 = vunpack.c.l.b16 %v259
      %v573 = vunpack.c.h.b16 %v259
      %v574 = vunpack.c.l.b16 %v260
      %v575 = vunpack.c.h.b16 %v260
      %v576 = vunpack.c.l.b16 %v261
      %v577 = vunpack.c.h.b16 %v261
      %v578 = vunpack.c.l.b16 %v262
      %v579 = vunpack.c.h.b16 %v262
      %v580 = vunpack.c.l.b16 %v263
      %v581 = vunpack.c.h.b16 %v263
      %v582 = vunpack.c.l.b16 %v264
      %v583 = vunpack.c.h.b16 %v264
      %v584 = vunpack.c.l.b16 %v265
      %v585 = vunpack.c.h.b16 %v265
      %v586 = vunpack.c.l.b16 %v266
      %v587 = vunpack.c.h.b16 %v266
      %v588 = vunpack.c.l.b16 %v267
      %v589 = vunpack.c.h.b16 %v267
      %v590 = vunpack.c.l.b16 %v268
      %v591 = vunpack.c.h.b16 %v268
      %v592 = vunpack.c.l.b16 %v269
      %v593 = vunpack.c.h.b16 %v269
      %v594 = vunpack.c.l.b16 %v270
      %v595 = vunpack.c.h.b16 %v270
      %v596 = vunpack.c.l.b16 %v271
      %v597 = vunpack.c.h.b16 %v271
      %v598 = vunpack.c.l.b16 %v272
      %v599 = vunpack.c.h.b16 %v272
      %v600 = vunpack.c.l.b16 %v273
      %v601 = vunpack.c.h.b16 %v273
      %v602 = vunpack.c.l.b16 %v274
      %v603 = vunpack.c.h.b16 %v274
      %v604 = vunpack.c.l.b16 %v275
      %v605 = vunpack.c.h.b16 %v275
      %v606 = vunpack.c.l.b16 %v276
      %v607 = vunpack.c.h.b16 %v276
      %v608 = vunpack.c.l.b16 %v277
      %v609 = vunpack.c.h.b16 %v277
      %v610 = vunpack.c.l.b16 %v278
      %v611 = vunpack.c.h.b16 %v278
      %v612 = vunpack.c.l.b16 %v279
      %v613 = vunpack.c.h.b16 %v279
      %v614 = vunpack.c.l.b16 %v280
      %v615 = vunpack.c.h.b16 %v280
      %v616 = vunpack.c.l.b16 %v281
      %v617 = vunpack.c.h.b16 %v281
      %v618 = vunpack.c.l.b16 %v282
      %v619 = vunpack.c.h.b16 %v282
      %v620 = vunpack.c.l.b16 %v283
      %v621 = vunpack.c.h.b16 %v283
      %v622 = vunpack.c.l.b16 %v284
      %v623 = vunpack.c.h.b16 %v284
      %v624 = vunpack.c.l.b16 %v285
      %v625 = vunpack.c.h.b16 %v285
      %v626 = vunpack.c.l.b16 %v286
      %v627 = vunpack.c.h.b16 %v286
      %v628 = vunpack.c.l.b16 %v287
      %v629 = vunpack.c.h.b16 %v287
      %v630 = vunpack.c.l.b16 %v288
      %v631 = vunpack.c.h.b16 %v288
      %v632 = vunpack.c.l.b16 %v289
      %v633 = vunpack.c.h.b16 %v289
      %v634 = vunpack.c.l.b16 %v290
      %v635 = vunpack.c.h.b16 %v290
      %v636 = vunpack.c.l.b16 %v291
      %v637 = vunpack.c.h.b16 %v291
      %v638 = vunpack.c.l.b16 %v292
      %v639 = vunpack.c.h.b16 %v292
      %v640 = vunpack.c.l.b16 %v293
      %v641 = vunpack.c.h.b16 %v293
      %v642 = vunpack.c.l.b16 %v294
      %v643 = vunpack.c.h.b16 %v294
      %v644 = vunpack.c.l.b16 %v295
      %v645 = vunpack.c.h.b16 %v295
      %v646 = vunpack.c.l.b16 %v296
      %v647 = vunpack.c.h.b16 %v296
      %v648 = vunpack.c.l.b16 %v297
      %v649 = vunpack.c.h.b16 %v297
      %v650 = vunpack.c.l.b16 %v298
      %v651 = vunpack.c.h.b16 %v298
      %v652 = vunpack.c.l.b16 %v299
      %v653 = vunpack.c.h.b16 %v299
      %v654 = vunpack.c.l.b16 %v300
      %v655 = vunpack.c.h.b16 %v300
      %v656 = vunpack.c.l.b16 %v301
      %v657 = vunpack.c.h.b16 %v301
      %v658 = vunpack.c.l.b16 %v302
      %v659 = vunpack.c.h.b16 %v302
      %v660 = vunpack.c.l.b16 %v303
      %v661 = vunpack.c.h.b16 %v303
      %v662 = vunpack.c.l.b16 %v304
      %v663 = vunpack.c.h.b16 %v304
      %v664 = vunpack.c.l.b16 %v305
      %v665 = vunpack.c.h.b16 %v305
      %v666 = vunpack.c.l.b16 %v306
      %v667 = vunpack.c.h.b16 %v306
      %v668 = vunpack.c.l.b16 %v307
      %v669 = vunpack.c.h.b16 %v307
      %v670 = vunpack.c.l.b16 %v308
      %v671 = vunpack.c.h.b16 %v308
      %v672 = vunpack.c.l.b16 %v309
      %v673 = vunpack.c.h.b16 %v309
      %v674 = vunpack.c.l.b16 %v310
      %v675 = vunpack.c.h.b16 %v310
      %v676 = vunpack.c.l.b16 %v311
      %v677 = vunpack.c.h.b16 %v311
      %v678 = vunpack.c.l.b16 %v312
      %v679 = vunpack.c.h.b16 %v312
      %v680 = vunpack.c.l.b16 %v313
      %v681 = vunpack.c.h.b16 %v313
      %v682 = vunpack.c.l.b16 %v314
      %v683 = vunpack.c.h.b16 %v314
      %v684 = vunpack.c.l.b16 %v315
      %v685 = vunpack.c.h.b16 %v315
      %v686 = vunpack.c.l.b16 %v316
      %v687 = vunpack.c.h.b16 %v316
      %v688 = vunpack.c.l.b16 %v317
      %v689 = vunpack.c.h.b16 %v317
      %v690 = vunpack.c.l.b16 %v318
      %v691 = vunpack.c.h.b16 %v318
      %v692 = vunpack.c.l.b16 %v319
      %v693 = vunpack.c.h.b16 %v319
      %v694 = vunpack.c.l.b16 %v320
      %v695 = vunpack.c.h.b16 %v320
      %v696 = vunpack.c.l.b16 %v321
      %v697 = vunpack.c.h.b16 %v321
      %v698 = vunpack.c.l.b16 %v322
      %v699 = vunpack.c.h.b16 %v322
      %v700 = vunpack.c.l.b16 %v323
      %v701 = vunpack.c.h.b16 %v323
      %v702 = vunpack.c.l.b16 %v324
      %v703 = vunpack.c.h.b16 %v324
      %v704 = vunpack.c.l.b16 %v325
      %v705 = vunpack.c.h.b16 %v325
      %v706 = vunpack.c.l.b16 %v326
      %v707 = vunpack.c.h.b16 %v326
      %v708 = vunpack.c.l.b16 %v327
      %v709 = vunpack.c.h.b16 %v327
      %v710 = vunpack.c.l.b16 %v328
      %v711 = vunpack.c.h.b16 %v328
      %v712 = vunpack.c.l.b16 %v329
      %v713 = vunpack.c.h.b16 %v329
      %v714 = vunpack.c.l.b16 %v330
      %v715 = vunpack.c.h.b16 %v330
      %v716 = vunpack.c.l.b16 %v331
      %v717 = vunpack.c.h.b16 %v331
      %v718 = vunpack.c.l.b16 %v332
      %v719 = vunpack.c.h.b16 %v332
      %v720 = vunpack.c.l.b16 %v333
      %v721 = vunpack.c.h.b16 %v333
      %v722 = vunpack.c.l.b16 %v334
      %v723 = vunpack.c.h.b16 %v334
      %v724 = vunpack.c.l.b16 %v335
      %v725 = vunpack.c.h.b16 %v335
      %v726 = vunpack.c.l.b16 %v336
      %v727 = vunpack.c.h.b16 %v336
      %v728 = vunpack.c.l.b16 %v337
      %v729 = vunpack.c.h.b16 %v337
      %v730 = vunpack.c.l.b16 %v338
      %v731 = vunpack.c.h.b16 %v338
      %v732 = vunpack.c.l.b16 %v339
      %v733 = vunpack.c.h.b16 %v339
      %v734 = vunpack.c.l.b16 %v340
      %v735 = vunpack.c.h.b16 %v340
      %v736 = vunpack.c.l.b16 %v341
      %v737 = vunpack.c.h.b16 %v341
      %v738 = vunpack.c.l.b16 %v342
      %v739 = vunpack.c.h.b16 %v342
      %v740 = vunpack.c.l.b16 %v343
      %v741 = vunpack.c.h.b16 %v343
      %v742 = vunpack.c.l.b16 %v344
      %v743 = vunpack.c.h.b16 %v344
      %v744 = vunpack.c.l.b16 %v345
      %v745 = vunpack.c.h.b16 %v345
      %v746 = vunpack.c.l.b16 %v346
      %v747 = vunpack.c.h.b16 %v346
      %v748 = vunpack.c.l.b16 %v347
      %v749 = vunpack.c.h.b16 %v347
      %v750 = vunpack.c.l.b16 %v348
      %v751 = vunpack.c.h.b16 %v348
      %v752 = vunpack.c.l.b16 %v349
      %v753 = vunpack.c.h.b16 %v349
      %v754 = vunpack.c.l.b16 %v350
      %v755 = vunpack.c.h.b16 %v350
      %v756 = vunpack.c.l.b16 %v351
      %v757 = vunpack.c.h.b16 %v351
      %v758 = vunpack.c.l.b16 %v352
      %v759 = vunpack.c.h.b16 %v352
      %v760 = vunpack.c.l.b16 %v353
      %v761 = vunpack.c.h.b16 %v353
      %v762 = vunpack.c.l.b16 %v354
      %v763 = vunpack.c.h.b16 %v354
      %v764 = vunpack.c.l.b16 %v355
      %v765 = vunpack.c.h.b16 %v355
      %v766 = vunpack.c.l.b16 %v356
      %v767 = vunpack.c.h.b16 %v356
      %v768 = vpack.c.b16 %v514, %v512
      %v769 = vpack.c.b16 %v515, %v513
      %v770 = vpack.c.b16 %v518, %v516
      %v771 = vpack.c.b16 %v519, %v517
      %v772 = vpack.c.b16 %v522, %v520
      %v773 = vpack.c.b16 %v523, %v521
      %v774 = vpack.c.b16 %v526, %v524
      %v775 = vpack.c.b16 %v527, %v525
      %v776 = vpack.c.b16 %v530, %v528
      %v777 = vpack.c.b16 %v531, %v529
      %v778 = vpack.c.b16 %v534, %v532
      %v779 = vpack.c.b16 %v535, %v533
      %v780 = vpack.c.b16 %v538, %v536
      %v781 = vpack.c.b16 %v539, %v537
      %v782 = vpack.c.b16 %v542, %v540
      %v783 = vpack.c.b16 %v543, %v541
      %v784 = vpack.c.b16 %v546, %v544
      %v785 = vpack.c.b16 %v547, %v545
      %v786 = vpack.c.b16 %v550, %v548
      %v787 = vpack.c.b16 %v551, %v549
      %v788 = vpack.c.b16 %v554, %v552
      %v789 = vpack.c.b16 %v555, %v553
      %v790 = vpack.c.b16 %v558, %v556
      %v791 = vpack.c.b16 %v559, %v557
      %v792 = vpack.c.b16 %v562, %v560
      %v793 = vpack.c.b16 %v563, %v561
      %v794 = vpack.c.b16 %v566, %v564
      %v795 = vpack.c.b16 %v567, %v565
      %v796 = vpack.c.b16 %v570, %v568
      %v797 = vpack.c.b16 %v571, %v569
      %v798 = vpack.c.b16 %v574, %v572
      %v799 = vpack.c.b16 %v575, %v573
      %v800 = vpack.c.b16 %v578, %v576
      %v801 = vpack.c.b16 %v579, %v577
      %v802 = vpack.c.b16 %v582, %v580
      %v803 = vpack.c.b16 %v583, %v581
      %v804 = vpack.c.b16 %v586, %v584
      %v805 = vpack.c.b16 %v587, %v585
      %v806 = vpack.c.b16 %v590, %v588
      %v807 = vpack.c.b16 %v591, %v589
      %v808 = vpack.c.b16 %v594, %v592
      %v809 = vpack.c.b16 %v595, %v593
      %v810 = vpack.c.b16 %v598, %v596
      %v811 = vpack.c.b16 %v599, %v597
      %v812 = vpack.c.b16 %v602, %v600
      %v813 = vpack.c.b16 %v603, %v601
      %v814 = vpack.c.b16 %v606, %v604
      %v815 = vpack.c.b16 %v607, %v605
      %v816 = vpack.c.b16 %v610, %v608
      %v817 = vpack.c.b16 %v611, %v609
      %v818 = vpack.c.b16 %v614, %v612
      %v819 = vpack.c.b16 %v615, %v613
      %v820 = vpack.c.b16 %v618, %v616
      %v821 = vpack.c.b16 %v619, %v617
      %v822 = vpack.c.b16 %v622, %v620
      %v823 = vpack.c.b16 %v623, %v621
      %v824 = vpack.c.b16 %v626, %v624
      %v825 = vpack.c.b16 %v627, %v625
      %v826 = vpack.c.b16 %v630, %v628
      %v827 = vpack.c.b16 %v631, %v629
      %v828 = vpack.c.b16 %v634, %v632
      %v829 = vpack.c.b16 %v635, %v633
      %v830 = vpack.c.b16 %v638, %v636
      %v831 = vpack.c.b16 %v639, %v637
      %v832 = vpack.c.b16 %v642, %v640
      %v833 = vpack.c.b16 %v643, %v641
      %v834 = vpack.c.b16 %v646, %v644
      %v835 = vpack.c.b16 %v647, %v645
      %v836 = vpack.c.b16 %v650, %v648
      %v837 = vpack.c.b16 %v651, %v649
      %v838 = vpack.c.b16 %v654, %v652
      %v839 = vpack.c.b16 %v655, %v653
      %v840 = vpack.c.b16 %v658, %v656
      %v841 = vpack.c.b16 %v659, %v657
      %v842 = vpack.c.b16 %v662, %v660
      %v843 = vpack.c.b16 %v663, %v661
      %v844 = vpack.c.b16 %v666, %v664
      %v845 = vpack.c.b16 %v667, %v665
      %v846 = vpack.c.b16 %v670, %v668
      %v847 = vpack.c.b16 %v671, %v669
      %v848 = vpack.c.b16 %v674, %v672
      %v849 = vpack.c.b16 %v675, %v673
      %v850 = vpack.c.b16 %v678, %v676
      %v851 = vpack.c.b16 %v679, %v677
      %v852 = vpack.c.b16 %v682, %v680
      %v853 = vpack.c.b16 %v683, %v681
      %v854 = vpack.c.b16 %v686, %v684
      %v855 = vpack.c.b16 %v687, %v685
      %v856 = vpack.c.b16 %v690, %v688
      %v857 = vpack.c.b16 %v691, %v689
      %v858 = vpack.c.b16 %v694, %v692
      %v859 = vpack.c.b16 %v695, %v693
      %v860 = vpack.c.b16 %v698, %v696
      %v861 = vpack.c.b16 %v699, %v697
      %v862 = vpack.c.b16 %v702, %v700
      %v863 = vpack.c.b16 %v703, %v701
      %v864 = vpack.c.b16 %v706, %v704
      %v865 = vpack.c.b16 %v707, %v705
      %v866 = vpack.c.b16 %v710, %v708
      %v867 = vpack.c.b16 %v711, %v709
      %v868 = vpack.c.b16 %v714, %v712
      %v869 = vpack.c.b16 %v715, %v713
      %v870 = vpack.c.b16 %v718, %v716
      %v871 = vpack.c.b16 %v719, %v717
      %v872 = vpack.c.b16 %v722, %v720
      %v873 = vpack.c.b16 %v723, %v721
      %v874 = vpack.c.b16 %v726, %v724
      %v875 = vpack.c.b16 %v727, %v725
      %v876 = vpack.c.b16 %v730, %v728
      %v877 = vpack.c.b16 %v731, %v729
      %v878 = vpack.c.b16 %v734, %v732
      %v879 = vpack.c.b16 %v735, %v733
      %v880 = vpack.c.b16 %v738, %v736
      %v881 = vpack.c.b16 %v739, %v737
      %v882 = vpack.c.b16 %v742, %v740
      %v883 = vpack.c.b16 %v743, %v741
      %v884 = vpack.c.b16 %v746, %v744
      %v885 = vpack.c.b16 %v747, %v745
      %v886 = vpack.c.b16 %v750, %v748
      %v887 = vpack.c.b16 %v751, %v749
      %v888 = vpack.c.b16 %v754, %v752
      %v889 = vpack.c.b16 %v755, %v753
      %v890 = vpack.c.b16 %v758, %v756
      %v891 = vpack.c.b16 %v759, %v757
      %v892 = vpack.c.b16 %v762, %v760
      %v893 = vpack.c.b16 %v763, %v761
      %v894 = vpack.c.b16 %v766, %v764
      %v895 = vpack.c.b16 %v767, %v765
      %v980 = vunpack.c.l.b16 %v357
      %v981 = vunpack.c.l.b16 %v358
      %v982 = vunpack.c.l.b16 %v359
      %v983 = vunpack.c.l.b16 %v360
      %v984 = vunpack.c.l.b16 %v361
      %v985 = vunpack.c.l.b16 %v362
      %v986 = vunpack.c.l.b16 %v363
      %v987 = vunpack.c.l.b16 %v364
      %v988 = vunpack.c.l.b16 %v365
      %v989 = vunpack.c.l.b16 %v366
      %v990 = vunpack.c.l.b16 %v367
      %v991 = vunpack.c.l.b16 %v368
      %v992 = vunpack.c.l.b16 %v369
      %v993 = vunpack.c.l.b16 %v370
      %v994 = vunpack.c.l.b16 %v371
      %v995 = vunpack.c.l.b16 %v372
      %v996 = vunpack.c.l.b16 %v373
      %v997 = vunpack.c.l.b16 %v374
      %v998 = vunpack.c.l.b16 %v375
      %v999 = vunpack.c.l.b16 %v376
      %v1000 = vpack.c.b16 %v981, %v980
      %v1001 = vpack.c.b16 %v983, %v982
      %v1002 = vpack.c.b16 %v985, %v984
      %v1003 = vpack.c.b16 %v987, %v986
      %v1004 = vpack.c.b16 %v989, %v988
      %v1005 = vpack.c.b16 %v991, %v990
      %v1006 = vpack.c.b16 %v993, %v992
      %v1007 = vpack.c.b16 %v995, %v994
      %v1008 = vpack.c.b16 %v997, %v996
      %v1009 = vpack.c.b16 %v999, %v998
      %vm1020 = vcmask 261120
      %v1022 = vsel %vm1020, %v769, 0
      %v1025 = vsel %vm1020, %v771, 0
      %v1028 = vsel %vm1020, %v773, 0
      %v1031 = vsel %vm1020, %v775, 0
      %v1034 = vsel %vm1020, %v777, 0
      %v1037 = vsel %vm1020, %v779, 0
      %v1040 = vsel %vm1020, %v781, 0
      %v1043 = vsel %vm1020, %v783, 0
      %v1046 = vsel %vm1020, %v785, 0
      %v1049 = vsel %vm1020, %v787, 0
      %v1052 = vsel %vm1020, %v789, 0
      %v1055 = vsel %vm1020, %v791, 0
      %v1058 = vsel %vm1020, %v793, 0
      %v1061 = vsel %vm1020, %v795, 0
      %v1064 = vsel %vm1020, %v797, 0
      %v1067 = vsel %vm1020, %v799, 0
      %v1070 = vsel %vm1020, %v801, 0
      %v1073 = vsel %vm1020, %v803, 0
      %v1076 = vsel %vm1020, %v805, 0
      %v1079 = vsel %vm1020, %v807, 0
      %v1082 = vsel %vm1020, %v809, 0
      %v1085 = vsel %vm1020, %v811, 0
      %v1088 = vsel %vm1020, %v813, 0
      %v1091 = vsel %vm1020, %v815, 0
      %v1094 = vsel %vm1020, %v817, 0
      %v1097 = vsel %vm1020, %v819, 0
      %v1100 = vsel %vm1020, %v821, 0
      %v1103 = vsel %vm1020, %v823, 0
      %v1106 = vsel %vm1020, %v825, 0
      %v1109 = vsel %vm1020, %v827, 0
      %v1112 = vsel %vm1020, %v829, 0
      %v1115 = vsel %vm1020, %v831, 0
      %v1118 = vsel %vm1020, %v833, 0
      %v1121 = vsel %vm1020, %v835, 0
      %v1124 = vsel %vm1020, %v837, 0
      %v1127 = vsel %vm1020, %v839, 0
      %v1130 = vsel %vm1020, %v841, 0
      %v1133 = vsel %vm1020, %v843, 0
      %v1136 = vsel %vm1020, %v845, 0
      %v1139 = vsel %vm1020, %v847, 0
      %v1142 = vsel %vm1020, %v849, 0
      %v1145 = vsel %vm1020, %v851, 0
      %v1148 = vsel %vm1020, %v853, 0
      %v1151 = vsel %vm1020, %v855, 0
      %v1154 = vsel %vm1020, %v857, 0
      %v1157 = vsel %vm1020, %v859, 0
      %v1160 = vsel %vm1020, %v861, 0
      %v1163 = vsel %vm1020, %v863, 0
      %v1166 = vsel %vm1020, %v865, 0
      %v1169 = vsel %vm1020, %v867, 0
      %v1172 = vsel %vm1020, %v869, 0
      %v1175 = vsel %vm1020, %v871, 0
      %v1178 = vsel %vm1020, %v873, 0
      %v1181 = vsel %vm1020, %v875, 0
      %v1184 = vsel %vm1020, %v877, 0
      %v1187 = vsel %vm1020, %v879, 0
      %v1190 = vsel %vm1020, %v881, 0
      %v1193 = vsel %vm1020, %v883, 0
      %v1196 = vsel %vm1020, %v885, 0
      %v1199 = vsel %vm1020, %v887, 0
      %v1202 = vsel %vm1020, %v889, 0
      %v1205 = vsel %vm1020, %v891, 0
      %v1208 = vsel %vm1020, %v893, 0
      %v1211 = vsel %vm1020, %v895, 0
      %1213 = vmatprep.subr.bf16.mxu0 0
      %1214 = vmatpush1.bf16.msra.mxu0 %v1000
      %1215 = vmatprep.subr.bf16.mxu0 0
      %1216 = vmatpush1.bf16.msra.mxu0 %v1001
      %1217 = vmatprep.subr.bf16.mxu0 0
      %1218 = vmatpush1.bf16.msra.mxu0 %v1002
      %1219 = vmatprep.subr.bf16.mxu0 0
      %1220 = vmatpush1.bf16.msra.mxu0 %v1003
      %1221 = vmatprep.subr.bf16.mxu0 0
      %1222 = vmatpush1.bf16.msra.mxu0 %v1004
      %1223 = vmatprep.subr.bf16.mxu0 0
      %1224 = vmatpush1.bf16.msra.mxu0 %v1005
      %1225 = vmatprep.subr.bf16.mxu0 0
      %1226 = vmatpush1.bf16.msra.mxu0 %v1006
      %1227 = vmatprep.subr.bf16.mxu0 0
      %1228 = vmatpush1.bf16.msra.mxu0 %v1007
      %1229 = vmatprep.subr.bf16.mxu0 0
      %1230 = vmatpush1.bf16.msra.mxu0 %v1008
      %1231 = vmatprep.subr.bf16.mxu0 0
      %1232 = vmatpush1.bf16.msra.mxu0 %v1009
      %1233 = vmatprep.subr.bf16.mxu0 0
      %1234 = vmatpush1.bf16.msra.mxu0 0
      %1235 = vmatprep.subr.bf16.mxu0 0
      %1236 = vmatpush1.bf16.msra.mxu0 0
      %1237 = vmatprep.subr.bf16.mxu0 0
      %1238 = vmatpush1.bf16.msra.mxu0 0
      %1239 = vmatprep.subr.bf16.mxu0 0
      %1240 = vmatpush1.bf16.msra.mxu0 0
      %1241 = vmatprep.subr.bf16.mxu0 0
      %1242 = vmatpush1.bf16.msra.mxu0 0
      %1243 = vmatprep.subr.bf16.mxu0 0
      %1244 = vmatpush1.bf16.msra.mxu0 0
      %1245 = vmatprep.mubr.bf16.mxu0 %v1022
      %1246 = vmatmul.mubr.bf16.gmra.mrb[0].mxu0 %v768
      %v1247 = vpop.f32.mrb[0].mxu0
      %v1248 = vadd.f32 %v382, %v1247
      %v1249 = vpop.f32.mrb[0].mxu0
      %v1250 = vpop.f32.mrb[0].mxu0
      %v1251 = vadd.f32 %v382, %v1250
      %v1252 = vpop.f32.mrb[0].mxu0
      %1253 = vmatprep.mubr.bf16.mxu0 %v1025
      %1254 = vmatmul.mubr.bf16.gmra.mrb[0].mxu0 %v770
      %v1255 = vpop.f32.mrb[0].mxu0
      %v1256 = vadd.f32 %v382, %v1255
      %v1257 = vpop.f32.mrb[0].mxu0
      %v1258 = vpop.f32.mrb[0].mxu0
      %v1259 = vadd.f32 %v382, %v1258
      %v1260 = vpop.f32.mrb[0].mxu0
      %1261 = vmatprep.mubr.bf16.mxu0 %v1028
      %1262 = vmatmul.mubr.bf16.gmra.mrb[0].mxu0 %v772
      %v1263 = vpop.f32.mrb[0].mxu0
      %v1264 = vadd.f32 %v382, %v1263
      %v1265 = vpop.f32.mrb[0].mxu0
      %v1266 = vpop.f32.mrb[0].mxu0
      %v1267 = vadd.f32 %v382, %v1266
      %v1268 = vpop.f32.mrb[0].mxu0
      %1269 = vmatprep.mubr.bf16.mxu0 %v1031
      %1270 = vmatmul.mubr.bf16.gmra.mrb[0].mxu0 %v774
      %v1271 = vpop.f32.mrb[0].mxu0
      %v1272 = vadd.f32 %v382, %v1271
      %v1273 = vpop.f32.mrb[0].mxu0
      %v1274 = vpop.f32.mrb[0].mxu0
      %v1275 = vadd.f32 %v382, %v1274
      %v1276 = vpop.f32.mrb[0].mxu0
      %1277 = vmatprep.mubr.bf16.mxu0 %v1034
      %1278 = vmatmul.mubr.bf16.gmra.mrb[0].mxu0 %v776
      %v1279 = vpop.f32.mrb[0].mxu0
      %v1280 = vadd.f32 %v382, %v1279
      %v1281 = vpop.f32.mrb[0].mxu0
      %v1282 = vpop.f32.mrb[0].mxu0
      %v1283 = vadd.f32 %v382, %v1282
      %v1284 = vpop.f32.mrb[0].mxu0
      %1285 = vmatprep.mubr.bf16.mxu0 %v1037
      %1286 = vmatmul.mubr.bf16.gmra.mrb[0].mxu0 %v778
      %v1287 = vpop.f32.mrb[0].mxu0
      %v1288 = vadd.f32 %v382, %v1287
      %v1289 = vpop.f32.mrb[0].mxu0
      %v1290 = vpop.f32.mrb[0].mxu0
      %v1291 = vadd.f32 %v382, %v1290
      %v1292 = vpop.f32.mrb[0].mxu0
      %1293 = vmatprep.mubr.bf16.mxu0 %v1040
      %1294 = vmatmul.mubr.bf16.gmra.mrb[0].mxu0 %v780
      %v1295 = vpop.f32.mrb[0].mxu0
      %v1296 = vadd.f32 %v382, %v1295
      %v1297 = vpop.f32.mrb[0].mxu0
      %v1298 = vpop.f32.mrb[0].mxu0
      %v1299 = vadd.f32 %v382, %v1298
      %v1300 = vpop.f32.mrb[0].mxu0
      %1301 = vmatprep.mubr.bf16.mxu0 %v1043
      %1302 = vmatmul.mubr.bf16.gmra.mrb[0].mxu0 %v782
      %v1303 = vpop.f32.mrb[0].mxu0
      %v1304 = vadd.f32 %v382, %v1303
      %v1305 = vpop.f32.mrb[0].mxu0
      %v1306 = vpop.f32.mrb[0].mxu0
      %v1307 = vadd.f32 %v382, %v1306
      %v1308 = vpop.f32.mrb[0].mxu0
      %1309 = vmatprep.mubr.bf16.mxu0 %v1046
      %1310 = vmatmul.mubr.bf16.gmra.mrb[0].mxu0 %v784
      %v1311 = vpop.f32.mrb[0].mxu0
      %v1312 = vadd.f32 %v382, %v1311
      %v1313 = vpop.f32.mrb[0].mxu0
      %v1314 = vpop.f32.mrb[0].mxu0
      %v1315 = vadd.f32 %v382, %v1314
      %v1316 = vpop.f32.mrb[0].mxu0
      %1317 = vmatprep.mubr.bf16.mxu0 %v1049
      %1318 = vmatmul.mubr.bf16.gmra.mrb[0].mxu0 %v786
      %v1319 = vpop.f32.mrb[0].mxu0
      %v1320 = vadd.f32 %v382, %v1319
      %v1321 = vpop.f32.mrb[0].mxu0
      %v1322 = vpop.f32.mrb[0].mxu0
      %v1323 = vadd.f32 %v382, %v1322
      %v1324 = vpop.f32.mrb[0].mxu0
      %1325 = vmatprep.mubr.bf16.mxu0 %v1052
      %1326 = vmatmul.mubr.bf16.gmra.mrb[0].mxu0 %v788
      %v1327 = vpop.f32.mrb[0].mxu0
      %v1328 = vadd.f32 %v382, %v1327
      %v1329 = vpop.f32.mrb[0].mxu0
      %v1330 = vpop.f32.mrb[0].mxu0
      %v1331 = vadd.f32 %v382, %v1330
      %v1332 = vpop.f32.mrb[0].mxu0
      %1333 = vmatprep.mubr.bf16.mxu0 %v1055
      %1334 = vmatmul.mubr.bf16.gmra.mrb[0].mxu0 %v790
      %v1335 = vpop.f32.mrb[0].mxu0
      %v1336 = vadd.f32 %v382, %v1335
      %v1337 = vpop.f32.mrb[0].mxu0
      %v1338 = vpop.f32.mrb[0].mxu0
      %v1339 = vadd.f32 %v382, %v1338
      %v1340 = vpop.f32.mrb[0].mxu0
      %1341 = vmatprep.mubr.bf16.mxu0 %v1058
      %1342 = vmatmul.mubr.bf16.gmra.mrb[0].mxu0 %v792
      %v1343 = vpop.f32.mrb[0].mxu0
      %v1344 = vadd.f32 %v382, %v1343
      %v1345 = vpop.f32.mrb[0].mxu0
      %v1346 = vpop.f32.mrb[0].mxu0
      %v1347 = vadd.f32 %v382, %v1346
      %v1348 = vpop.f32.mrb[0].mxu0
      %1349 = vmatprep.mubr.bf16.mxu0 %v1061
      %1350 = vmatmul.mubr.bf16.gmra.mrb[0].mxu0 %v794
      %v1351 = vpop.f32.mrb[0].mxu0
      %v1352 = vadd.f32 %v382, %v1351
      %v1353 = vpop.f32.mrb[0].mxu0
      %v1354 = vpop.f32.mrb[0].mxu0
      %v1355 = vadd.f32 %v382, %v1354
      %v1356 = vpop.f32.mrb[0].mxu0
      %1357 = vmatprep.mubr.bf16.mxu0 %v1064
      %1358 = vmatmul.mubr.bf16.gmra.mrb[0].mxu0 %v796
      %v1359 = vpop.f32.mrb[0].mxu0
      %v1360 = vadd.f32 %v382, %v1359
      %v1361 = vpop.f32.mrb[0].mxu0
      %v1362 = vpop.f32.mrb[0].mxu0
      %v1363 = vadd.f32 %v382, %v1362
      %v1364 = vpop.f32.mrb[0].mxu0
      %1365 = vmatprep.mubr.bf16.mxu0 %v1067
      %1366 = vmatmul.mubr.bf16.gmra.mrb[0].mxu0 %v798
      %v1367 = vpop.f32.mrb[0].mxu0
      %v1368 = vadd.f32 %v382, %v1367
      %v1369 = vpop.f32.mrb[0].mxu0
      %v1370 = vpop.f32.mrb[0].mxu0
      %v1371 = vadd.f32 %v382, %v1370
      %v1372 = vpop.f32.mrb[0].mxu0
      %1373 = vmatprep.mubr.bf16.mxu0 %v1070
      %1374 = vmatmul.mubr.bf16.gmra.mrb[0].mxu0 %v800
      %v1375 = vpop.f32.mrb[0].mxu0
      %v1376 = vadd.f32 %v382, %v1375
      %v1377 = vpop.f32.mrb[0].mxu0
      %v1378 = vpop.f32.mrb[0].mxu0
      %v1379 = vadd.f32 %v382, %v1378
      %v1380 = vpop.f32.mrb[0].mxu0
      %1381 = vmatprep.mubr.bf16.mxu0 %v1073
      %1382 = vmatmul.mubr.bf16.gmra.mrb[0].mxu0 %v802
      %v1383 = vpop.f32.mrb[0].mxu0
      %v1384 = vadd.f32 %v382, %v1383
      %v1385 = vpop.f32.mrb[0].mxu0
      %v1386 = vpop.f32.mrb[0].mxu0
      %v1387 = vadd.f32 %v382, %v1386
      %v1388 = vpop.f32.mrb[0].mxu0
      %1389 = vmatprep.mubr.bf16.mxu0 %v1076
      %1390 = vmatmul.mubr.bf16.gmra.mrb[0].mxu0 %v804
      %v1391 = vpop.f32.mrb[0].mxu0
      %v1392 = vadd.f32 %v382, %v1391
      %v1393 = vpop.f32.mrb[0].mxu0
      %v1394 = vpop.f32.mrb[0].mxu0
      %v1395 = vadd.f32 %v382, %v1394
      %v1396 = vpop.f32.mrb[0].mxu0
      %1397 = vmatprep.mubr.bf16.mxu0 %v1079
      %1398 = vmatmul.mubr.bf16.gmra.mrb[0].mxu0 %v806
      %v1399 = vpop.f32.mrb[0].mxu0
      %v1400 = vadd.f32 %v382, %v1399
      %v1401 = vpop.f32.mrb[0].mxu0
      %v1402 = vpop.f32.mrb[0].mxu0
      %v1403 = vadd.f32 %v382, %v1402
      %v1404 = vpop.f32.mrb[0].mxu0
      %1405 = vmatprep.mubr.bf16.mxu0 %v1082
      %1406 = vmatmul.mubr.bf16.gmra.mrb[0].mxu0 %v808
      %v1407 = vpop.f32.mrb[0].mxu0
      %v1408 = vadd.f32 %v382, %v1407
      %v1409 = vpop.f32.mrb[0].mxu0
      %v1410 = vpop.f32.mrb[0].mxu0
      %v1411 = vadd.f32 %v382, %v1410
      %v1412 = vpop.f32.mrb[0].mxu0
      %1413 = vmatprep.mubr.bf16.mxu0 %v1085
      %1414 = vmatmul.mubr.bf16.gmra.mrb[0].mxu0 %v810
      %v1415 = vpop.f32.mrb[0].mxu0
      %v1416 = vadd.f32 %v382, %v1415
      %v1417 = vpop.f32.mrb[0].mxu0
      %v1418 = vpop.f32.mrb[0].mxu0
      %v1419 = vadd.f32 %v382, %v1418
      %v1420 = vpop.f32.mrb[0].mxu0
      %1421 = vmatprep.mubr.bf16.mxu0 %v1088
      %1422 = vmatmul.mubr.bf16.gmra.mrb[0].mxu0 %v812
      %v1423 = vpop.f32.mrb[0].mxu0
      %v1424 = vadd.f32 %v382, %v1423
      %v1425 = vpop.f32.mrb[0].mxu0
      %v1426 = vpop.f32.mrb[0].mxu0
      %v1427 = vadd.f32 %v382, %v1426
      %v1428 = vpop.f32.mrb[0].mxu0
      %1429 = vmatprep.mubr.bf16.mxu0 %v1091
      %1430 = vmatmul.mubr.bf16.gmra.mrb[0].mxu0 %v814
      %v1431 = vpop.f32.mrb[0].mxu0
      %v1432 = vadd.f32 %v382, %v1431
      %v1433 = vpop.f32.mrb[0].mxu0
      %v1434 = vpop.f32.mrb[0].mxu0
      %v1435 = vadd.f32 %v382, %v1434
      %v1436 = vpop.f32.mrb[0].mxu0
      %1437 = vmatprep.mubr.bf16.mxu0 %v1094
      %1438 = vmatmul.mubr.bf16.gmra.mrb[0].mxu0 %v816
      %v1439 = vpop.f32.mrb[0].mxu0
      %v1440 = vadd.f32 %v382, %v1439
      %v1441 = vpop.f32.mrb[0].mxu0
      %v1442 = vpop.f32.mrb[0].mxu0
      %v1443 = vadd.f32 %v382, %v1442
      %v1444 = vpop.f32.mrb[0].mxu0
      %1445 = vmatprep.mubr.bf16.mxu0 %v1097
      %1446 = vmatmul.mubr.bf16.gmra.mrb[0].mxu0 %v818
      %v1447 = vpop.f32.mrb[0].mxu0
      %v1448 = vadd.f32 %v382, %v1447
      %v1449 = vpop.f32.mrb[0].mxu0
      %v1450 = vpop.f32.mrb[0].mxu0
      %v1451 = vadd.f32 %v382, %v1450
      %v1452 = vpop.f32.mrb[0].mxu0
      %1453 = vmatprep.mubr.bf16.mxu0 %v1100
      %1454 = vmatmul.mubr.bf16.gmra.mrb[0].mxu0 %v820
      %v1455 = vpop.f32.mrb[0].mxu0
      %v1456 = vadd.f32 %v382, %v1455
      %v1457 = vpop.f32.mrb[0].mxu0
      %v1458 = vpop.f32.mrb[0].mxu0
      %v1459 = vadd.f32 %v382, %v1458
      %v1460 = vpop.f32.mrb[0].mxu0
      %1461 = vmatprep.mubr.bf16.mxu0 %v1103
      %1462 = vmatmul.mubr.bf16.gmra.mrb[0].mxu0 %v822
      %v1463 = vpop.f32.mrb[0].mxu0
      %v1464 = vadd.f32 %v382, %v1463
      %v1465 = vpop.f32.mrb[0].mxu0
      %v1466 = vpop.f32.mrb[0].mxu0
      %v1467 = vadd.f32 %v382, %v1466
      %v1468 = vpop.f32.mrb[0].mxu0
      %1469 = vmatprep.mubr.bf16.mxu0 %v1106
      %1470 = vmatmul.mubr.bf16.gmra.mrb[0].mxu0 %v824
      %v1471 = vpop.f32.mrb[0].mxu0
      %v1472 = vadd.f32 %v382, %v1471
      %v1473 = vpop.f32.mrb[0].mxu0
      %v1474 = vpop.f32.mrb[0].mxu0
      %v1475 = vadd.f32 %v382, %v1474
      %v1476 = vpop.f32.mrb[0].mxu0
      %1477 = vmatprep.mubr.bf16.mxu0 %v1109
      %1478 = vmatmul.mubr.bf16.gmra.mrb[0].mxu0 %v826
      %v1479 = vpop.f32.mrb[0].mxu0
      %v1480 = vadd.f32 %v382, %v1479
      %v1481 = vpop.f32.mrb[0].mxu0
      %v1482 = vpop.f32.mrb[0].mxu0
      %v1483 = vadd.f32 %v382, %v1482
      %v1484 = vpop.f32.mrb[0].mxu0
      %1485 = vmatprep.mubr.bf16.mxu0 %v1112
      %1486 = vmatmul.mubr.bf16.gmra.mrb[0].mxu0 %v828
      %v1487 = vpop.f32.mrb[0].mxu0
      %v1488 = vadd.f32 %v382, %v1487
      %v1489 = vpop.f32.mrb[0].mxu0
      %v1490 = vpop.f32.mrb[0].mxu0
      %v1491 = vadd.f32 %v382, %v1490
      %v1492 = vpop.f32.mrb[0].mxu0
      %1493 = vmatprep.mubr.bf16.mxu0 %v1115
      %1494 = vmatmul.mubr.bf16.gmra.mrb[0].mxu0 %v830
      %v1495 = vpop.f32.mrb[0].mxu0
      %v1496 = vadd.f32 %v382, %v1495
      %v1497 = vpop.f32.mrb[0].mxu0
      %v1498 = vpop.f32.mrb[0].mxu0
      %v1499 = vadd.f32 %v382, %v1498
      %v1500 = vpop.f32.mrb[0].mxu0
      %1501 = vmatprep.mubr.bf16.mxu0 %v1118
      %1502 = vmatmul.mubr.bf16.gmra.mrb[0].mxu0 %v832
      %v1503 = vpop.f32.mrb[0].mxu0
      %v1504 = vadd.f32 %v382, %v1503
      %v1505 = vpop.f32.mrb[0].mxu0
      %v1506 = vpop.f32.mrb[0].mxu0
      %v1507 = vadd.f32 %v382, %v1506
      %v1508 = vpop.f32.mrb[0].mxu0
      %1509 = vmatprep.mubr.bf16.mxu0 %v1121
      %1510 = vmatmul.mubr.bf16.gmra.mrb[0].mxu0 %v834
      %v1511 = vpop.f32.mrb[0].mxu0
      %v1512 = vadd.f32 %v382, %v1511
      %v1513 = vpop.f32.mrb[0].mxu0
      %v1514 = vpop.f32.mrb[0].mxu0
      %v1515 = vadd.f32 %v382, %v1514
      %v1516 = vpop.f32.mrb[0].mxu0
      %1517 = vmatprep.mubr.bf16.mxu0 %v1124
      %1518 = vmatmul.mubr.bf16.gmra.mrb[0].mxu0 %v836
      %v1519 = vpop.f32.mrb[0].mxu0
      %v1520 = vadd.f32 %v382, %v1519
      %v1521 = vpop.f32.mrb[0].mxu0
      %v1522 = vpop.f32.mrb[0].mxu0
      %v1523 = vadd.f32 %v382, %v1522
      %v1524 = vpop.f32.mrb[0].mxu0
      %1525 = vmatprep.mubr.bf16.mxu0 %v1127
      %1526 = vmatmul.mubr.bf16.gmra.mrb[0].mxu0 %v838
      %v1527 = vpop.f32.mrb[0].mxu0
      %v1528 = vadd.f32 %v382, %v1527
      %v1529 = vpop.f32.mrb[0].mxu0
      %v1530 = vpop.f32.mrb[0].mxu0
      %v1531 = vadd.f32 %v382, %v1530
      %v1532 = vpop.f32.mrb[0].mxu0
      %1533 = vmatprep.mubr.bf16.mxu0 %v1130
      %1534 = vmatmul.mubr.bf16.gmra.mrb[0].mxu0 %v840
      %v1535 = vpop.f32.mrb[0].mxu0
      %v1536 = vadd.f32 %v382, %v1535
      %v1537 = vpop.f32.mrb[0].mxu0
      %v1538 = vpop.f32.mrb[0].mxu0
      %v1539 = vadd.f32 %v382, %v1538
      %v1540 = vpop.f32.mrb[0].mxu0
      %1541 = vmatprep.mubr.bf16.mxu0 %v1133
      %1542 = vmatmul.mubr.bf16.gmra.mrb[0].mxu0 %v842
      %v1543 = vpop.f32.mrb[0].mxu0
      %v1544 = vadd.f32 %v382, %v1543
      %v1545 = vpop.f32.mrb[0].mxu0
      %v1546 = vpop.f32.mrb[0].mxu0
      %v1547 = vadd.f32 %v382, %v1546
      %v1548 = vpop.f32.mrb[0].mxu0
      %1549 = vmatprep.mubr.bf16.mxu0 %v1136
      %1550 = vmatmul.mubr.bf16.gmra.mrb[0].mxu0 %v844
      %v1551 = vpop.f32.mrb[0].mxu0
      %v1552 = vadd.f32 %v382, %v1551
      %v1553 = vpop.f32.mrb[0].mxu0
      %v1554 = vpop.f32.mrb[0].mxu0
      %v1555 = vadd.f32 %v382, %v1554
      %v1556 = vpop.f32.mrb[0].mxu0
      %1557 = vmatprep.mubr.bf16.mxu0 %v1139
      %1558 = vmatmul.mubr.bf16.gmra.mrb[0].mxu0 %v846
      %v1559 = vpop.f32.mrb[0].mxu0
      %v1560 = vadd.f32 %v382, %v1559
      %v1561 = vpop.f32.mrb[0].mxu0
      %v1562 = vpop.f32.mrb[0].mxu0
      %v1563 = vadd.f32 %v382, %v1562
      %v1564 = vpop.f32.mrb[0].mxu0
      %1565 = vmatprep.mubr.bf16.mxu0 %v1142
      %1566 = vmatmul.mubr.bf16.gmra.mrb[0].mxu0 %v848
      %v1567 = vpop.f32.mrb[0].mxu0
      %v1568 = vadd.f32 %v382, %v1567
      %v1569 = vpop.f32.mrb[0].mxu0
      %v1570 = vpop.f32.mrb[0].mxu0
      %v1571 = vadd.f32 %v382, %v1570
      %v1572 = vpop.f32.mrb[0].mxu0
      %1573 = vmatprep.mubr.bf16.mxu0 %v1145
      %1574 = vmatmul.mubr.bf16.gmra.mrb[0].mxu0 %v850
      %v1575 = vpop.f32.mrb[0].mxu0
      %v1576 = vadd.f32 %v382, %v1575
      %v1577 = vpop.f32.mrb[0].mxu0
      %v1578 = vpop.f32.mrb[0].mxu0
      %v1579 = vadd.f32 %v382, %v1578
      %v1580 = vpop.f32.mrb[0].mxu0
      %1581 = vmatprep.mubr.bf16.mxu0 %v1148
      %1582 = vmatmul.mubr.bf16.gmra.mrb[0].mxu0 %v852
      %v1583 = vpop.f32.mrb[0].mxu0
      %v1584 = vadd.f32 %v382, %v1583
      %v1585 = vpop.f32.mrb[0].mxu0
      %v1586 = vpop.f32.mrb[0].mxu0
      %v1587 = vadd.f32 %v382, %v1586
      %v1588 = vpop.f32.mrb[0].mxu0
      %1589 = vmatprep.mubr.bf16.mxu0 %v1151
      %1590 = vmatmul.mubr.bf16.gmra.mrb[0].mxu0 %v854
      %v1591 = vpop.f32.mrb[0].mxu0
      %v1592 = vadd.f32 %v382, %v1591
      %v1593 = vpop.f32.mrb[0].mxu0
      %v1594 = vpop.f32.mrb[0].mxu0
      %v1595 = vadd.f32 %v382, %v1594
      %v1596 = vpop.f32.mrb[0].mxu0
      %1597 = vmatprep.mubr.bf16.mxu0 %v1154
      %1598 = vmatmul.mubr.bf16.gmra.mrb[0].mxu0 %v856
      %v1599 = vpop.f32.mrb[0].mxu0
      %v1600 = vadd.f32 %v382, %v1599
      %v1601 = vpop.f32.mrb[0].mxu0
      %v1602 = vpop.f32.mrb[0].mxu0
      %v1603 = vadd.f32 %v382, %v1602
      %v1604 = vpop.f32.mrb[0].mxu0
      %1605 = vmatprep.mubr.bf16.mxu0 %v1157
      %1606 = vmatmul.mubr.bf16.gmra.mrb[0].mxu0 %v858
      %v1607 = vpop.f32.mrb[0].mxu0
      %v1608 = vadd.f32 %v382, %v1607
      %v1609 = vpop.f32.mrb[0].mxu0
      %v1610 = vpop.f32.mrb[0].mxu0
      %v1611 = vadd.f32 %v382, %v1610
      %v1612 = vpop.f32.mrb[0].mxu0
      %1613 = vmatprep.mubr.bf16.mxu0 %v1160
      %1614 = vmatmul.mubr.bf16.gmra.mrb[0].mxu0 %v860
      %v1615 = vpop.f32.mrb[0].mxu0
      %v1616 = vadd.f32 %v382, %v1615
      %v1617 = vpop.f32.mrb[0].mxu0
      %v1618 = vpop.f32.mrb[0].mxu0
      %v1619 = vadd.f32 %v382, %v1618
      %v1620 = vpop.f32.mrb[0].mxu0
      %1621 = vmatprep.mubr.bf16.mxu0 %v1163
      %1622 = vmatmul.mubr.bf16.gmra.mrb[0].mxu0 %v862
      %v1623 = vpop.f32.mrb[0].mxu0
      %v1624 = vadd.f32 %v382, %v1623
      %v1625 = vpop.f32.mrb[0].mxu0
      %v1626 = vpop.f32.mrb[0].mxu0
      %v1627 = vadd.f32 %v382, %v1626
      %v1628 = vpop.f32.mrb[0].mxu0
      %1629 = vmatprep.mubr.bf16.mxu0 %v1166
      %1630 = vmatmul.mubr.bf16.gmra.mrb[0].mxu0 %v864
      %v1631 = vpop.f32.mrb[0].mxu0
      %v1632 = vadd.f32 %v382, %v1631
      %v1633 = vpop.f32.mrb[0].mxu0
      %v1634 = vpop.f32.mrb[0].mxu0
      %v1635 = vadd.f32 %v382, %v1634
      %v1636 = vpop.f32.mrb[0].mxu0
      %1637 = vmatprep.mubr.bf16.mxu0 %v1169
      %1638 = vmatmul.mubr.bf16.gmra.mrb[0].mxu0 %v866
      %v1639 = vpop.f32.mrb[0].mxu0
      %v1640 = vadd.f32 %v382, %v1639
      %v1641 = vpop.f32.mrb[0].mxu0
      %v1642 = vpop.f32.mrb[0].mxu0
      %v1643 = vadd.f32 %v382, %v1642
      %v1644 = vpop.f32.mrb[0].mxu0
      %1645 = vmatprep.mubr.bf16.mxu0 %v1172
      %1646 = vmatmul.mubr.bf16.gmra.mrb[0].mxu0 %v868
      %v1647 = vpop.f32.mrb[0].mxu0
      %v1648 = vadd.f32 %v382, %v1647
      %v1649 = vpop.f32.mrb[0].mxu0
      %v1650 = vpop.f32.mrb[0].mxu0
      %v1651 = vadd.f32 %v382, %v1650
      %v1652 = vpop.f32.mrb[0].mxu0
      %1653 = vmatprep.mubr.bf16.mxu0 %v1175
      %1654 = vmatmul.mubr.bf16.gmra.mrb[0].mxu0 %v870
      %v1655 = vpop.f32.mrb[0].mxu0
      %v1656 = vadd.f32 %v382, %v1655
      %v1657 = vpop.f32.mrb[0].mxu0
      %v1658 = vpop.f32.mrb[0].mxu0
      %v1659 = vadd.f32 %v382, %v1658
      %v1660 = vpop.f32.mrb[0].mxu0
      %1661 = vmatprep.mubr.bf16.mxu0 %v1178
      %1662 = vmatmul.mubr.bf16.gmra.mrb[0].mxu0 %v872
      %v1663 = vpop.f32.mrb[0].mxu0
      %v1664 = vadd.f32 %v382, %v1663
      %v1665 = vpop.f32.mrb[0].mxu0
      %v1666 = vpop.f32.mrb[0].mxu0
      %v1667 = vadd.f32 %v382, %v1666
      %v1668 = vpop.f32.mrb[0].mxu0
      %1669 = vmatprep.mubr.bf16.mxu0 %v1181
      %1670 = vmatmul.mubr.bf16.gmra.mrb[0].mxu0 %v874
      %v1671 = vpop.f32.mrb[0].mxu0
      %v1672 = vadd.f32 %v382, %v1671
      %v1673 = vpop.f32.mrb[0].mxu0
      %v1674 = vpop.f32.mrb[0].mxu0
      %v1675 = vadd.f32 %v382, %v1674
      %v1676 = vpop.f32.mrb[0].mxu0
      %1677 = vmatprep.mubr.bf16.mxu0 %v1184
      %1678 = vmatmul.mubr.bf16.gmra.mrb[0].mxu0 %v876
      %v1679 = vpop.f32.mrb[0].mxu0
      %v1680 = vadd.f32 %v382, %v1679
      %v1681 = vpop.f32.mrb[0].mxu0
      %v1682 = vpop.f32.mrb[0].mxu0
      %v1683 = vadd.f32 %v382, %v1682
      %v1684 = vpop.f32.mrb[0].mxu0
      %1685 = vmatprep.mubr.bf16.mxu0 %v1187
      %1686 = vmatmul.mubr.bf16.gmra.mrb[0].mxu0 %v878
      %v1687 = vpop.f32.mrb[0].mxu0
      %v1688 = vadd.f32 %v382, %v1687
      %v1689 = vpop.f32.mrb[0].mxu0
      %v1690 = vpop.f32.mrb[0].mxu0
      %v1691 = vadd.f32 %v382, %v1690
      %v1692 = vpop.f32.mrb[0].mxu0
      %1693 = vmatprep.mubr.bf16.mxu0 %v1190
      %1694 = vmatmul.mubr.bf16.gmra.mrb[0].mxu0 %v880
      %v1695 = vpop.f32.mrb[0].mxu0
      %v1696 = vadd.f32 %v382, %v1695
      %v1697 = vpop.f32.mrb[0].mxu0
      %v1698 = vpop.f32.mrb[0].mxu0
      %v1699 = vadd.f32 %v382, %v1698
      %v1700 = vpop.f32.mrb[0].mxu0
      %1701 = vmatprep.mubr.bf16.mxu0 %v1193
      %1702 = vmatmul.mubr.bf16.gmra.mrb[0].mxu0 %v882
      %v1703 = vpop.f32.mrb[0].mxu0
      %v1704 = vadd.f32 %v382, %v1703
      %v1705 = vpop.f32.mrb[0].mxu0
      %v1706 = vpop.f32.mrb[0].mxu0
      %v1707 = vadd.f32 %v382, %v1706
      %v1708 = vpop.f32.mrb[0].mxu0
      %1709 = vmatprep.mubr.bf16.mxu0 %v1196
      %1710 = vmatmul.mubr.bf16.gmra.mrb[0].mxu0 %v884
      %v1711 = vpop.f32.mrb[0].mxu0
      %v1712 = vadd.f32 %v382, %v1711
      %v1713 = vpop.f32.mrb[0].mxu0
      %v1714 = vpop.f32.mrb[0].mxu0
      %v1715 = vadd.f32 %v382, %v1714
      %v1716 = vpop.f32.mrb[0].mxu0
      %1717 = vmatprep.mubr.bf16.mxu0 %v1199
      %1718 = vmatmul.mubr.bf16.gmra.mrb[0].mxu0 %v886
      %v1719 = vpop.f32.mrb[0].mxu0
      %v1720 = vadd.f32 %v382, %v1719
      %v1721 = vpop.f32.mrb[0].mxu0
      %v1722 = vpop.f32.mrb[0].mxu0
      %v1723 = vadd.f32 %v382, %v1722
      %v1724 = vpop.f32.mrb[0].mxu0
      %1725 = vmatprep.mubr.bf16.mxu0 %v1202
      %1726 = vmatmul.mubr.bf16.gmra.mrb[0].mxu0 %v888
      %v1727 = vpop.f32.mrb[0].mxu0
      %v1728 = vadd.f32 %v382, %v1727
      %v1729 = vpop.f32.mrb[0].mxu0
      %v1730 = vpop.f32.mrb[0].mxu0
      %v1731 = vadd.f32 %v382, %v1730
      %v1732 = vpop.f32.mrb[0].mxu0
      %1733 = vmatprep.mubr.bf16.mxu0 %v1205
      %1734 = vmatmul.mubr.bf16.gmra.mrb[0].mxu0 %v890
      %v1735 = vpop.f32.mrb[0].mxu0
      %v1736 = vadd.f32 %v382, %v1735
      %v1737 = vpop.f32.mrb[0].mxu0
      %v1738 = vpop.f32.mrb[0].mxu0
      %v1739 = vadd.f32 %v382, %v1738
      %v1740 = vpop.f32.mrb[0].mxu0
      %1741 = vmatprep.mubr.bf16.mxu0 %v1208
      %1742 = vmatmul.mubr.bf16.gmra.mrb[0].mxu0 %v892
      %v1743 = vpop.f32.mrb[0].mxu0
      %v1744 = vadd.f32 %v382, %v1743
      %v1745 = vpop.f32.mrb[0].mxu0
      %v1746 = vpop.f32.mrb[0].mxu0
      %v1747 = vadd.f32 %v382, %v1746
      %v1748 = vpop.f32.mrb[0].mxu0
      %1749 = vmatprep.mubr.bf16.mxu0 %v1211
      %1750 = vmatmul.mubr.bf16.gmra.mrb[0].mxu0 %v894
      %v1751 = vpop.f32.mrb[0].mxu0
      %v1752 = vadd.f32 %v382, %v1751
      %v1753 = vpop.f32.mrb[0].mxu0
      %v1754 = vpop.f32.mrb[0].mxu0
      %v1755 = vadd.f32 %v382, %v1754
      %v1756 = vpop.f32.mrb[0].mxu0
      %1757 = vdwg.mxu0
      %v1758 = vmax.f32 %v1248, 0.0
      %v1759 = vmax.f32 %v1251, 0.0
      %v1760 = vmax.f32 %v1256, 0.0
      %v1761 = vmax.f32 %v1259, 0.0
      %v1762 = vmax.f32 %v1264, 0.0
      %v1763 = vmax.f32 %v1267, 0.0
      %v1764 = vmax.f32 %v1272, 0.0
      %v1765 = vmax.f32 %v1275, 0.0
      %v1766 = vmax.f32 %v1280, 0.0
      %v1767 = vmax.f32 %v1283, 0.0
      %v1768 = vmax.f32 %v1288, 0.0
      %v1769 = vmax.f32 %v1291, 0.0
      %v1770 = vmax.f32 %v1296, 0.0
      %v1771 = vmax.f32 %v1299, 0.0
      %v1772 = vmax.f32 %v1304, 0.0
      %v1773 = vmax.f32 %v1307, 0.0
      %v1774 = vmax.f32 %v1312, 0.0
      %v1775 = vmax.f32 %v1315, 0.0
      %v1776 = vmax.f32 %v1320, 0.0
      %v1777 = vmax.f32 %v1323, 0.0
      %v1778 = vmax.f32 %v1328, 0.0
      %v1779 = vmax.f32 %v1331, 0.0
      %v1780 = vmax.f32 %v1336, 0.0
      %v1781 = vmax.f32 %v1339, 0.0
      %v1782 = vmax.f32 %v1344, 0.0
      %v1783 = vmax.f32 %v1347, 0.0
      %v1784 = vmax.f32 %v1352, 0.0
      %v1785 = vmax.f32 %v1355, 0.0
      %v1786 = vmax.f32 %v1360, 0.0
      %v1787 = vmax.f32 %v1363, 0.0
      %v1788 = vmax.f32 %v1368, 0.0
      %v1789 = vmax.f32 %v1371, 0.0
      %v1790 = vmax.f32 %v1376, 0.0
      %v1791 = vmax.f32 %v1379, 0.0
      %v1792 = vmax.f32 %v1384, 0.0
      %v1793 = vmax.f32 %v1387, 0.0
      %v1794 = vmax.f32 %v1392, 0.0
      %v1795 = vmax.f32 %v1395, 0.0
      %v1796 = vmax.f32 %v1400, 0.0
      %v1797 = vmax.f32 %v1403, 0.0
      %v1798 = vmax.f32 %v1408, 0.0
      %v1799 = vmax.f32 %v1411, 0.0
      %v1800 = vmax.f32 %v1416, 0.0
      %v1801 = vmax.f32 %v1419, 0.0
      %v1802 = vmax.f32 %v1424, 0.0
      %v1803 = vmax.f32 %v1427, 0.0
      %v1804 = vmax.f32 %v1432, 0.0
      %v1805 = vmax.f32 %v1435, 0.0
      %v1806 = vmax.f32 %v1440, 0.0
      %v1807 = vmax.f32 %v1443, 0.0
      %v1808 = vmax.f32 %v1448, 0.0
      %v1809 = vmax.f32 %v1451, 0.0
      %v1810 = vmax.f32 %v1456, 0.0
      %v1811 = vmax.f32 %v1459, 0.0
      %v1812 = vmax.f32 %v1464, 0.0
      %v1813 = vmax.f32 %v1467, 0.0
      %v1814 = vmax.f32 %v1472, 0.0
      %v1815 = vmax.f32 %v1475, 0.0
      %v1816 = vmax.f32 %v1480, 0.0
      %v1817 = vmax.f32 %v1483, 0.0
      %v1818 = vmax.f32 %v1488, 0.0
      %v1819 = vmax.f32 %v1491, 0.0
      %v1820 = vmax.f32 %v1496, 0.0
      %v1821 = vmax.f32 %v1499, 0.0
      %v1822 = vmax.f32 %v1504, 0.0
      %v1823 = vmax.f32 %v1507, 0.0
      %v1824 = vmax.f32 %v1512, 0.0
      %v1825 = vmax.f32 %v1515, 0.0
      %v1826 = vmax.f32 %v1520, 0.0
      %v1827 = vmax.f32 %v1523, 0.0
      %v1828 = vmax.f32 %v1528, 0.0
      %v1829 = vmax.f32 %v1531, 0.0
      %v1830 = vmax.f32 %v1536, 0.0
      %v1831 = vmax.f32 %v1539, 0.0
      %v1832 = vmax.f32 %v1544, 0.0
      %v1833 = vmax.f32 %v1547, 0.0
      %v1834 = vmax.f32 %v1552, 0.0
      %v1835 = vmax.f32 %v1555, 0.0
      %v1836 = vmax.f32 %v1560, 0.0
      %v1837 = vmax.f32 %v1563, 0.0
      %v1838 = vmax.f32 %v1568, 0.0
      %v1839 = vmax.f32 %v1571, 0.0
      %v1840 = vmax.f32 %v1576, 0.0
      %v1841 = vmax.f32 %v1579, 0.0
      %v1842 = vmax.f32 %v1584, 0.0
      %v1843 = vmax.f32 %v1587, 0.0
      %v1844 = vmax.f32 %v1592, 0.0
      %v1845 = vmax.f32 %v1595, 0.0
      %v1846 = vmax.f32 %v1600, 0.0
      %v1847 = vmax.f32 %v1603, 0.0
      %v1848 = vmax.f32 %v1608, 0.0
      %v1849 = vmax.f32 %v1611, 0.0
      %v1850 = vmax.f32 %v1616, 0.0
      %v1851 = vmax.f32 %v1619, 0.0
      %v1852 = vmax.f32 %v1624, 0.0
      %v1853 = vmax.f32 %v1627, 0.0
      %v1854 = vmax.f32 %v1632, 0.0
      %v1855 = vmax.f32 %v1635, 0.0
      %v1856 = vmax.f32 %v1640, 0.0
      %v1857 = vmax.f32 %v1643, 0.0
      %v1858 = vmax.f32 %v1648, 0.0
      %v1859 = vmax.f32 %v1651, 0.0
      %v1860 = vmax.f32 %v1656, 0.0
      %v1861 = vmax.f32 %v1659, 0.0
      %v1862 = vmax.f32 %v1664, 0.0
      %v1863 = vmax.f32 %v1667, 0.0
      %v1864 = vmax.f32 %v1672, 0.0
      %v1865 = vmax.f32 %v1675, 0.0
      %v1866 = vmax.f32 %v1680, 0.0
      %v1867 = vmax.f32 %v1683, 0.0
      %v1868 = vmax.f32 %v1688, 0.0
      %v1869 = vmax.f32 %v1691, 0.0
      %v1870 = vmax.f32 %v1696, 0.0
      %v1871 = vmax.f32 %v1699, 0.0
      %v1872 = vmax.f32 %v1704, 0.0
      %v1873 = vmax.f32 %v1707, 0.0
      %v1874 = vmax.f32 %v1712, 0.0
      %v1875 = vmax.f32 %v1715, 0.0
      %v1876 = vmax.f32 %v1720, 0.0
      %v1877 = vmax.f32 %v1723, 0.0
      %v1878 = vmax.f32 %v1728, 0.0
      %v1879 = vmax.f32 %v1731, 0.0
      %v1880 = vmax.f32 %v1736, 0.0
      %v1881 = vmax.f32 %v1739, 0.0
      %v1882 = vmax.f32 %v1744, 0.0
      %v1883 = vmax.f32 %v1747, 0.0
      %v1884 = vmax.f32 %v1752, 0.0
      %v1885 = vmax.f32 %v1755, 0.0
      %v1886 = vpack.c.bf16 %v1759, %v1758
      %v1887 = vpack.c.bf16 %v1761, %v1760
      %v1888 = vpack.c.bf16 %v1763, %v1762
      %v1889 = vpack.c.bf16 %v1765, %v1764
      %v1890 = vpack.c.bf16 %v1767, %v1766
      %v1891 = vpack.c.bf16 %v1769, %v1768
      %v1892 = vpack.c.bf16 %v1771, %v1770
      %v1893 = vpack.c.bf16 %v1773, %v1772
      %v1894 = vpack.c.bf16 %v1775, %v1774
      %v1895 = vpack.c.bf16 %v1777, %v1776
      %v1896 = vpack.c.bf16 %v1779, %v1778
      %v1897 = vpack.c.bf16 %v1781, %v1780
      %v1898 = vpack.c.bf16 %v1783, %v1782
      %v1899 = vpack.c.bf16 %v1785, %v1784
      %v1900 = vpack.c.bf16 %v1787, %v1786
      %v1901 = vpack.c.bf16 %v1789, %v1788
      %v1902 = vpack.c.bf16 %v1791, %v1790
      %v1903 = vpack.c.bf16 %v1793, %v1792
      %v1904 = vpack.c.bf16 %v1795, %v1794
      %v1905 = vpack.c.bf16 %v1797, %v1796
      %v1906 = vpack.c.bf16 %v1799, %v1798
      %v1907 = vpack.c.bf16 %v1801, %v1800
      %v1908 = vpack.c.bf16 %v1803, %v1802
      %v1909 = vpack.c.bf16 %v1805, %v1804
      %v1910 = vpack.c.bf16 %v1807, %v1806
      %v1911 = vpack.c.bf16 %v1809, %v1808
      %v1912 = vpack.c.bf16 %v1811, %v1810
      %v1913 = vpack.c.bf16 %v1813, %v1812
      %v1914 = vpack.c.bf16 %v1815, %v1814
      %v1915 = vpack.c.bf16 %v1817, %v1816
      %v1916 = vpack.c.bf16 %v1819, %v1818
      %v1917 = vpack.c.bf16 %v1821, %v1820
      %v1918 = vpack.c.bf16 %v1823, %v1822
      %v1919 = vpack.c.bf16 %v1825, %v1824
      %v1920 = vpack.c.bf16 %v1827, %v1826
      %v1921 = vpack.c.bf16 %v1829, %v1828
      %v1922 = vpack.c.bf16 %v1831, %v1830
      %v1923 = vpack.c.bf16 %v1833, %v1832
      %v1924 = vpack.c.bf16 %v1835, %v1834
      %v1925 = vpack.c.bf16 %v1837, %v1836
      %v1926 = vpack.c.bf16 %v1839, %v1838
      %v1927 = vpack.c.bf16 %v1841, %v1840
      %v1928 = vpack.c.bf16 %v1843, %v1842
      %v1929 = vpack.c.bf16 %v1845, %v1844
      %v1930 = vpack.c.bf16 %v1847, %v1846
      %v1931 = vpack.c.bf16 %v1849, %v1848
      %v1932 = vpack.c.bf16 %v1851, %v1850
      %v1933 = vpack.c.bf16 %v1853, %v1852
      %v1934 = vpack.c.bf16 %v1855, %v1854
      %v1935 = vpack.c.bf16 %v1857, %v1856
      %v1936 = vpack.c.bf16 %v1859, %v1858
      %v1937 = vpack.c.bf16 %v1861, %v1860
      %v1938 = vpack.c.bf16 %v1863, %v1862
      %v1939 = vpack.c.bf16 %v1865, %v1864
      %v1940 = vpack.c.bf16 %v1867, %v1866
      %v1941 = vpack.c.bf16 %v1869, %v1868
      %v1942 = vpack.c.bf16 %v1871, %v1870
      %v1943 = vpack.c.bf16 %v1873, %v1872
      %v1944 = vpack.c.bf16 %v1875, %v1874
      %v1945 = vpack.c.bf16 %v1877, %v1876
      %v1946 = vpack.c.bf16 %v1879, %v1878
      %v1947 = vpack.c.bf16 %v1881, %v1880
      %v1948 = vpack.c.bf16 %v1883, %v1882
      %v1949 = vpack.c.bf16 %v1885, %v1884
      %v2014 = vunpack.c.l.b16 %v1886
      %v2015 = vunpack.c.h.b16 %v1886
      %v2016 = vunpack.c.l.b16 %v1887
      %v2017 = vunpack.c.h.b16 %v1887
      %v2018 = vunpack.c.l.b16 %v1888
      %v2019 = vunpack.c.h.b16 %v1888
      %v2020 = vunpack.c.l.b16 %v1889
      %v2021 = vunpack.c.h.b16 %v1889
      %v2022 = vunpack.c.l.b16 %v1890
      %v2023 = vunpack.c.h.b16 %v1890
      %v2024 = vunpack.c.l.b16 %v1891
      %v2025 = vunpack.c.h.b16 %v1891
      %v2026 = vunpack.c.l.b16 %v1892
      %v2027 = vunpack.c.h.b16 %v1892
      %v2028 = vunpack.c.l.b16 %v1893
      %v2029 = vunpack.c.h.b16 %v1893
      %v2030 = vunpack.c.l.b16 %v1894
      %v2031 = vunpack.c.h.b16 %v1894
      %v2032 = vunpack.c.l.b16 %v1895
      %v2033 = vunpack.c.h.b16 %v1895
      %v2034 = vunpack.c.l.b16 %v1896
      %v2035 = vunpack.c.h.b16 %v1896
      %v2036 = vunpack.c.l.b16 %v1897
      %v2037 = vunpack.c.h.b16 %v1897
      %v2038 = vunpack.c.l.b16 %v1898
      %v2039 = vunpack.c.h.b16 %v1898
      %v2040 = vunpack.c.l.b16 %v1899
      %v2041 = vunpack.c.h.b16 %v1899
      %v2042 = vunpack.c.l.b16 %v1900
      %v2043 = vunpack.c.h.b16 %v1900
      %v2044 = vunpack.c.l.b16 %v1901
      %v2045 = vunpack.c.h.b16 %v1901
      %v2046 = vunpack.c.l.b16 %v1902
      %v2047 = vunpack.c.h.b16 %v1902
      %v2048 = vunpack.c.l.b16 %v1903
      %v2049 = vunpack.c.h.b16 %v1903
      %v2050 = vunpack.c.l.b16 %v1904
      %v2051 = vunpack.c.h.b16 %v1904
      %v2052 = vunpack.c.l.b16 %v1905
      %v2053 = vunpack.c.h.b16 %v1905
      %v2054 = vunpack.c.l.b16 %v1906
      %v2055 = vunpack.c.h.b16 %v1906
      %v2056 = vunpack.c.l.b16 %v1907
      %v2057 = vunpack.c.h.b16 %v1907
      %v2058 = vunpack.c.l.b16 %v1908
      %v2059 = vunpack.c.h.b16 %v1908
      %v2060 = vunpack.c.l.b16 %v1909
      %v2061 = vunpack.c.h.b16 %v1909
      %v2062 = vunpack.c.l.b16 %v1910
      %v2063 = vunpack.c.h.b16 %v1910
      %v2064 = vunpack.c.l.b16 %v1911
      %v2065 = vunpack.c.h.b16 %v1911
      %v2066 = vunpack.c.l.b16 %v1912
      %v2067 = vunpack.c.h.b16 %v1912
      %v2068 = vunpack.c.l.b16 %v1913
      %v2069 = vunpack.c.h.b16 %v1913
      %v2070 = vunpack.c.l.b16 %v1914
      %v2071 = vunpack.c.h.b16 %v1914
      %v2072 = vunpack.c.l.b16 %v1915
      %v2073 = vunpack.c.h.b16 %v1915
      %v2074 = vunpack.c.l.b16 %v1916
      %v2075 = vunpack.c.h.b16 %v1916
      %v2076 = vunpack.c.l.b16 %v1917
      %v2077 = vunpack.c.h.b16 %v1917
      %v2078 = vunpack.c.l.b16 %v1918
      %v2079 = vunpack.c.h.b16 %v1918
      %v2080 = vunpack.c.l.b16 %v1919
      %v2081 = vunpack.c.h.b16 %v1919
      %v2082 = vunpack.c.l.b16 %v1920
      %v2083 = vunpack.c.h.b16 %v1920
      %v2084 = vunpack.c.l.b16 %v1921
      %v2085 = vunpack.c.h.b16 %v1921
      %v2086 = vunpack.c.l.b16 %v1922
      %v2087 = vunpack.c.h.b16 %v1922
      %v2088 = vunpack.c.l.b16 %v1923
      %v2089 = vunpack.c.h.b16 %v1923
      %v2090 = vunpack.c.l.b16 %v1924
      %v2091 = vunpack.c.h.b16 %v1924
      %v2092 = vunpack.c.l.b16 %v1925
      %v2093 = vunpack.c.h.b16 %v1925
      %v2094 = vunpack.c.l.b16 %v1926
      %v2095 = vunpack.c.h.b16 %v1926
      %v2096 = vunpack.c.l.b16 %v1927
      %v2097 = vunpack.c.h.b16 %v1927
      %v2098 = vunpack.c.l.b16 %v1928
      %v2099 = vunpack.c.h.b16 %v1928
      %v2100 = vunpack.c.l.b16 %v1929
      %v2101 = vunpack.c.h.b16 %v1929
      %v2102 = vunpack.c.l.b16 %v1930
      %v2103 = vunpack.c.h.b16 %v1930
      %v2104 = vunpack.c.l.b16 %v1931
      %v2105 = vunpack.c.h.b16 %v1931
      %v2106 = vunpack.c.l.b16 %v1932
      %v2107 = vunpack.c.h.b16 %v1932
      %v2108 = vunpack.c.l.b16 %v1933
      %v2109 = vunpack.c.h.b16 %v1933
      %v2110 = vunpack.c.l.b16 %v1934
      %v2111 = vunpack.c.h.b16 %v1934
      %v2112 = vunpack.c.l.b16 %v1935
      %v2113 = vunpack.c.h.b16 %v1935
      %v2114 = vunpack.c.l.b16 %v1936
      %v2115 = vunpack.c.h.b16 %v1936
      %v2116 = vunpack.c.l.b16 %v1937
      %v2117 = vunpack.c.h.b16 %v1937
      %v2118 = vunpack.c.l.b16 %v1938
      %v2119 = vunpack.c.h.b16 %v1938
      %v2120 = vunpack.c.l.b16 %v1939
      %v2121 = vunpack.c.h.b16 %v1939
      %v2122 = vunpack.c.l.b16 %v1940
      %v2123 = vunpack.c.h.b16 %v1940
      %v2124 = vunpack.c.l.b16 %v1941
      %v2125 = vunpack.c.h.b16 %v1941
      %v2126 = vunpack.c.l.b16 %v1942
      %v2127 = vunpack.c.h.b16 %v1942
      %v2128 = vunpack.c.l.b16 %v1943
      %v2129 = vunpack.c.h.b16 %v1943
      %v2130 = vunpack.c.l.b16 %v1944
      %v2131 = vunpack.c.h.b16 %v1944
      %v2132 = vunpack.c.l.b16 %v1945
      %v2133 = vunpack.c.h.b16 %v1945
      %v2134 = vunpack.c.l.b16 %v1946
      %v2135 = vunpack.c.h.b16 %v1946
      %v2136 = vunpack.c.l.b16 %v1947
      %v2137 = vunpack.c.h.b16 %v1947
      %v2138 = vunpack.c.l.b16 %v1948
      %v2139 = vunpack.c.h.b16 %v1948
      %v2140 = vunpack.c.l.b16 %v1949
      %v2141 = vunpack.c.h.b16 %v1949
      %v2142 = vpack.c.b16 %v2014, %v2014
      %v2143 = vpack.c.b16 %v2015, %v2015
      %v2144 = vpack.c.b16 %v2016, %v2016
      %v2145 = vpack.c.b16 %v2017, %v2017
      %v2146 = vpack.c.b16 %v2018, %v2018
      %v2147 = vpack.c.b16 %v2019, %v2019
      %v2148 = vpack.c.b16 %v2020, %v2020
      %v2149 = vpack.c.b16 %v2021, %v2021
      %v2150 = vpack.c.b16 %v2022, %v2022
      %v2151 = vpack.c.b16 %v2023, %v2023
      %v2152 = vpack.c.b16 %v2024, %v2024
      %v2153 = vpack.c.b16 %v2025, %v2025
      %v2154 = vpack.c.b16 %v2026, %v2026
      %v2155 = vpack.c.b16 %v2027, %v2027
      %v2156 = vpack.c.b16 %v2028, %v2028
      %v2157 = vpack.c.b16 %v2029, %v2029
      %v2158 = vpack.c.b16 %v2030, %v2030
      %v2159 = vpack.c.b16 %v2031, %v2031
      %v2160 = vpack.c.b16 %v2032, %v2032
      %v2161 = vpack.c.b16 %v2033, %v2033
      %v2162 = vpack.c.b16 %v2034, %v2034
      %v2163 = vpack.c.b16 %v2035, %v2035
      %v2164 = vpack.c.b16 %v2036, %v2036
      %v2165 = vpack.c.b16 %v2037, %v2037
      %v2166 = vpack.c.b16 %v2038, %v2038
      %v2167 = vpack.c.b16 %v2039, %v2039
      %v2168 = vpack.c.b16 %v2040, %v2040
      %v2169 = vpack.c.b16 %v2041, %v2041
      %v2170 = vpack.c.b16 %v2042, %v2042
      %v2171 = vpack.c.b16 %v2043, %v2043
      %v2172 = vpack.c.b16 %v2044, %v2044
      %v2173 = vpack.c.b16 %v2045, %v2045
      %v2174 = vpack.c.b16 %v2046, %v2046
      %v2175 = vpack.c.b16 %v2047, %v2047
      %v2176 = vpack.c.b16 %v2048, %v2048
      %v2177 = vpack.c.b16 %v2049, %v2049
      %v2178 = vpack.c.b16 %v2050, %v2050
      %v2179 = vpack.c.b16 %v2051, %v2051
      %v2180 = vpack.c.b16 %v2052, %v2052
      %v2181 = vpack.c.b16 %v2053, %v2053
      %v2182 = vpack.c.b16 %v2054, %v2054
      %v2183 = vpack.c.b16 %v2055, %v2055
      %v2184 = vpack.c.b16 %v2056, %v2056
      %v2185 = vpack.c.b16 %v2057, %v2057
      %v2186 = vpack.c.b16 %v2058, %v2058
      %v2187 = vpack.c.b16 %v2059, %v2059
      %v2188 = vpack.c.b16 %v2060, %v2060
      %v2189 = vpack.c.b16 %v2061, %v2061
      %v2190 = vpack.c.b16 %v2062, %v2062
      %v2191 = vpack.c.b16 %v2063, %v2063
      %v2192 = vpack.c.b16 %v2064, %v2064
      %v2193 = vpack.c.b16 %v2065, %v2065
      %v2194 = vpack.c.b16 %v2066, %v2066
      %v2195 = vpack.c.b16 %v2067, %v2067
      %v2196 = vpack.c.b16 %v2068, %v2068
      %v2197 = vpack.c.b16 %v2069, %v2069
      %v2198 = vpack.c.b16 %v2070, %v2070
      %v2199 = vpack.c.b16 %v2071, %v2071
      %v2200 = vpack.c.b16 %v2072, %v2072
      %v2201 = vpack.c.b16 %v2073, %v2073
      %v2202 = vpack.c.b16 %v2074, %v2074
      %v2203 = vpack.c.b16 %v2075, %v2075
      %v2204 = vpack.c.b16 %v2076, %v2076
      %v2205 = vpack.c.b16 %v2077, %v2077
      %v2206 = vpack.c.b16 %v2078, %v2078
      %v2207 = vpack.c.b16 %v2079, %v2079
      %v2208 = vpack.c.b16 %v2080, %v2080
      %v2209 = vpack.c.b16 %v2081, %v2081
      %v2210 = vpack.c.b16 %v2082, %v2082
      %v2211 = vpack.c.b16 %v2083, %v2083
      %v2212 = vpack.c.b16 %v2084, %v2084
      %v2213 = vpack.c.b16 %v2085, %v2085
      %v2214 = vpack.c.b16 %v2086, %v2086
      %v2215 = vpack.c.b16 %v2087, %v2087
      %v2216 = vpack.c.b16 %v2088, %v2088
      %v2217 = vpack.c.b16 %v2089, %v2089
      %v2218 = vpack.c.b16 %v2090, %v2090
      %v2219 = vpack.c.b16 %v2091, %v2091
      %v2220 = vpack.c.b16 %v2092, %v2092
      %v2221 = vpack.c.b16 %v2093, %v2093
      %v2222 = vpack.c.b16 %v2094, %v2094
      %v2223 = vpack.c.b16 %v2095, %v2095
      %v2224 = vpack.c.b16 %v2096, %v2096
      %v2225 = vpack.c.b16 %v2097, %v2097
      %v2226 = vpack.c.b16 %v2098, %v2098
      %v2227 = vpack.c.b16 %v2099, %v2099
      %v2228 = vpack.c.b16 %v2100, %v2100
      %v2229 = vpack.c.b16 %v2101, %v2101
      %v2230 = vpack.c.b16 %v2102, %v2102
      %v2231 = vpack.c.b16 %v2103, %v2103
      %v2232 = vpack.c.b16 %v2104, %v2104
      %v2233 = vpack.c.b16 %v2105, %v2105
      %v2234 = vpack.c.b16 %v2106, %v2106
      %v2235 = vpack.c.b16 %v2107, %v2107
      %v2236 = vpack.c.b16 %v2108, %v2108
      %v2237 = vpack.c.b16 %v2109, %v2109
      %v2238 = vpack.c.b16 %v2110, %v2110
      %v2239 = vpack.c.b16 %v2111, %v2111
      %v2240 = vpack.c.b16 %v2112, %v2112
      %v2241 = vpack.c.b16 %v2113, %v2113
      %v2242 = vpack.c.b16 %v2114, %v2114
      %v2243 = vpack.c.b16 %v2115, %v2115
      %v2244 = vpack.c.b16 %v2116, %v2116
      %v2245 = vpack.c.b16 %v2117, %v2117
      %v2246 = vpack.c.b16 %v2118, %v2118
      %v2247 = vpack.c.b16 %v2119, %v2119
      %v2248 = vpack.c.b16 %v2120, %v2120
      %v2249 = vpack.c.b16 %v2121, %v2121
      %v2250 = vpack.c.b16 %v2122, %v2122
      %v2251 = vpack.c.b16 %v2123, %v2123
      %v2252 = vpack.c.b16 %v2124, %v2124
      %v2253 = vpack.c.b16 %v2125, %v2125
      %v2254 = vpack.c.b16 %v2126, %v2126
      %v2255 = vpack.c.b16 %v2127, %v2127
      %v2256 = vpack.c.b16 %v2128, %v2128
      %v2257 = vpack.c.b16 %v2129, %v2129
      %v2258 = vpack.c.b16 %v2130, %v2130
      %v2259 = vpack.c.b16 %v2131, %v2131
      %v2260 = vpack.c.b16 %v2132, %v2132
      %v2261 = vpack.c.b16 %v2133, %v2133
      %v2262 = vpack.c.b16 %v2134, %v2134
      %v2263 = vpack.c.b16 %v2135, %v2135
      %v2264 = vpack.c.b16 %v2136, %v2136
      %v2265 = vpack.c.b16 %v2137, %v2137
      %v2266 = vpack.c.b16 %v2138, %v2138
      %v2267 = vpack.c.b16 %v2139, %v2139
      %v2268 = vpack.c.b16 %v2140, %v2140
      %v2269 = vpack.c.b16 %v2141, %v2141
      %vm2398 = vcmask 519168
      %2399 = vst.msk [vmem:[%s226] sm:$0xf] %vm2398, %v2142
      %2400 = vst.msk [vmem:[%s226 + $0x4] sm:$0xf] %vm2398, %v2143
      %2401 = vst.msk [vmem:[%s226 + $0x8] sm:$0xf] %vm2398, %v2144
      %2402 = vst.msk [vmem:[%s226 + $0xc] sm:$0xf] %vm2398, %v2145
      %2403 = vst.msk [vmem:[%s226 + $0x10] sm:$0xf] %vm2398, %v2146
      %2404 = vst.msk [vmem:[%s226 + $0x14] sm:$0xf] %vm2398, %v2147
      %2405 = vst.msk [vmem:[%s226 + $0x18] sm:$0xf] %vm2398, %v2148
      %2406 = vst.msk [vmem:[%s226 + $0x1c] sm:$0xf] %vm2398, %v2149
      %2407 = vst.msk [vmem:[%s226 + $0x20] sm:$0xf] %vm2398, %v2150
      %2408 = vst.msk [vmem:[%s226 + $0x24] sm:$0xf] %vm2398, %v2151
      %2409 = vst.msk [vmem:[%s226 + $0x28] sm:$0xf] %vm2398, %v2152
      %2410 = vst.msk [vmem:[%s226 + $0x2c] sm:$0xf] %vm2398, %v2153
      %2411 = vst.msk [vmem:[%s226 + $0x30] sm:$0xf] %vm2398, %v2154
      %2412 = vst.msk [vmem:[%s226 + $0x34] sm:$0xf] %vm2398, %v2155
      %2413 = vst.msk [vmem:[%s226 + $0x38] sm:$0xf] %vm2398, %v2156
      %2414 = vst.msk [vmem:[%s226 + $0x3c] sm:$0xf] %vm2398, %v2157
      %2415 = vst.msk [vmem:[%s226 + $0x40] sm:$0xf] %vm2398, %v2158
      %2416 = vst.msk [vmem:[%s226 + $0x44] sm:$0xf] %vm2398, %v2159
      %2417 = vst.msk [vmem:[%s226 + $0x48] sm:$0xf] %vm2398, %v2160
      %2418 = vst.msk [vmem:[%s226 + $0x4c] sm:$0xf] %vm2398, %v2161
      %2419 = vst.msk [vmem:[%s226 + $0x50] sm:$0xf] %vm2398, %v2162
      %2420 = vst.msk [vmem:[%s226 + $0x54] sm:$0xf] %vm2398, %v2163
      %2421 = vst.msk [vmem:[%s226 + $0x58] sm:$0xf] %vm2398, %v2164
      %2422 = vst.msk [vmem:[%s226 + $0x5c] sm:$0xf] %vm2398, %v2165
      %2423 = vst.msk [vmem:[%s226 + $0x60] sm:$0xf] %vm2398, %v2166
      %2424 = vst.msk [vmem:[%s226 + $0x64] sm:$0xf] %vm2398, %v2167
      %2425 = vst.msk [vmem:[%s226 + $0x68] sm:$0xf] %vm2398, %v2168
      %2426 = vst.msk [vmem:[%s226 + $0x6c] sm:$0xf] %vm2398, %v2169
      %2427 = vst.msk [vmem:[%s226 + $0x70] sm:$0xf] %vm2398, %v2170
      %2428 = vst.msk [vmem:[%s226 + $0x74] sm:$0xf] %vm2398, %v2171
      %2429 = vst.msk [vmem:[%s226 + $0x78] sm:$0xf] %vm2398, %v2172
      %2430 = vst.msk [vmem:[%s226 + $0x7c] sm:$0xf] %vm2398, %v2173
      %2431 = vst.msk [vmem:[%s226 + $0x80] sm:$0xf] %vm2398, %v2174
      %2432 = vst.msk [vmem:[%s226 + $0x84] sm:$0xf] %vm2398, %v2175
      %2433 = vst.msk [vmem:[%s226 + $0x88] sm:$0xf] %vm2398, %v2176
      %2434 = vst.msk [vmem:[%s226 + $0x8c] sm:$0xf] %vm2398, %v2177
      %2435 = vst.msk [vmem:[%s226 + $0x90] sm:$0xf] %vm2398, %v2178
      %2436 = vst.msk [vmem:[%s226 + $0x94] sm:$0xf] %vm2398, %v2179
      %2437 = vst.msk [vmem:[%s226 + $0x98] sm:$0xf] %vm2398, %v2180
      %2438 = vst.msk [vmem:[%s226 + $0x9c] sm:$0xf] %vm2398, %v2181
      %2439 = vst.msk [vmem:[%s226 + $0xa0] sm:$0xf] %vm2398, %v2182
      %2440 = vst.msk [vmem:[%s226 + $0xa4] sm:$0xf] %vm2398, %v2183
      %2441 = vst.msk [vmem:[%s226 + $0xa8] sm:$0xf] %vm2398, %v2184
      %2442 = vst.msk [vmem:[%s226 + $0xac] sm:$0xf] %vm2398, %v2185
      %2443 = vst.msk [vmem:[%s226 + $0xb0] sm:$0xf] %vm2398, %v2186
      %2444 = vst.msk [vmem:[%s226 + $0xb4] sm:$0xf] %vm2398, %v2187
      %2445 = vst.msk [vmem:[%s226 + $0xb8] sm:$0xf] %vm2398, %v2188
      %2446 = vst.msk [vmem:[%s226 + $0xbc] sm:$0xf] %vm2398, %v2189
      %2447 = vst.msk [vmem:[%s226 + $0xc0] sm:$0xf] %vm2398, %v2190
      %2448 = vst.msk [vmem:[%s226 + $0xc4] sm:$0xf] %vm2398, %v2191
      %2449 = vst.msk [vmem:[%s226 + $0xc8] sm:$0xf] %vm2398, %v2192
      %2450 = vst.msk [vmem:[%s226 + $0xcc] sm:$0xf] %vm2398, %v2193
      %2451 = vst.msk [vmem:[%s226 + $0xd0] sm:$0xf] %vm2398, %v2194
      %2452 = vst.msk [vmem:[%s226 + $0xd4] sm:$0xf] %vm2398, %v2195
      %2453 = vst.msk [vmem:[%s226 + $0xd8] sm:$0xf] %vm2398, %v2196
      %2454 = vst.msk [vmem:[%s226 + $0xdc] sm:$0xf] %vm2398, %v2197
      %2455 = vst.msk [vmem:[%s226 + $0xe0] sm:$0xf] %vm2398, %v2198
      %2456 = vst.msk [vmem:[%s226 + $0xe4] sm:$0xf] %vm2398, %v2199
      %2457 = vst.msk [vmem:[%s226 + $0xe8] sm:$0xf] %vm2398, %v2200
      %2458 = vst.msk [vmem:[%s226 + $0xec] sm:$0xf] %vm2398, %v2201
      %2459 = vst.msk [vmem:[%s226 + $0xf0] sm:$0xf] %vm2398, %v2202
      %2460 = vst.msk [vmem:[%s226 + $0xf4] sm:$0xf] %vm2398, %v2203
      %2461 = vst.msk [vmem:[%s226 + $0xf8] sm:$0xf] %vm2398, %v2204
      %2462 = vst.msk [vmem:[%s226 + $0xfc] sm:$0xf] %vm2398, %v2205
      %2463 = vst.msk [vmem:[%s226 + $0x100] sm:$0xf] %vm2398, %v2206
      %2464 = vst.msk [vmem:[%s226 + $0x104] sm:$0xf] %vm2398, %v2207
      %2465 = vst.msk [vmem:[%s226 + $0x108] sm:$0xf] %vm2398, %v2208
      %2466 = vst.msk [vmem:[%s226 + $0x10c] sm:$0xf] %vm2398, %v2209
      %2467 = vst.msk [vmem:[%s226 + $0x110] sm:$0xf] %vm2398, %v2210
      %2468 = vst.msk [vmem:[%s226 + $0x114] sm:$0xf] %vm2398, %v2211
      %2469 = vst.msk [vmem:[%s226 + $0x118] sm:$0xf] %vm2398, %v2212
      %2470 = vst.msk [vmem:[%s226 + $0x11c] sm:$0xf] %vm2398, %v2213
      %2471 = vst.msk [vmem:[%s226 + $0x120] sm:$0xf] %vm2398, %v2214
      %2472 = vst.msk [vmem:[%s226 + $0x124] sm:$0xf] %vm2398, %v2215
      %2473 = vst.msk [vmem:[%s226 + $0x128] sm:$0xf] %vm2398, %v2216
      %2474 = vst.msk [vmem:[%s226 + $0x12c] sm:$0xf] %vm2398, %v2217
      %2475 = vst.msk [vmem:[%s226 + $0x130] sm:$0xf] %vm2398, %v2218
      %2476 = vst.msk [vmem:[%s226 + $0x134] sm:$0xf] %vm2398, %v2219
      %2477 = vst.msk [vmem:[%s226 + $0x138] sm:$0xf] %vm2398, %v2220
      %2478 = vst.msk [vmem:[%s226 + $0x13c] sm:$0xf] %vm2398, %v2221
      %2479 = vst.msk [vmem:[%s226 + $0x140] sm:$0xf] %vm2398, %v2222
      %2480 = vst.msk [vmem:[%s226 + $0x144] sm:$0xf] %vm2398, %v2223
      %2481 = vst.msk [vmem:[%s226 + $0x148] sm:$0xf] %vm2398, %v2224
      %2482 = vst.msk [vmem:[%s226 + $0x14c] sm:$0xf] %vm2398, %v2225
      %2483 = vst.msk [vmem:[%s226 + $0x150] sm:$0xf] %vm2398, %v2226
      %2484 = vst.msk [vmem:[%s226 + $0x154] sm:$0xf] %vm2398, %v2227
      %2485 = vst.msk [vmem:[%s226 + $0x158] sm:$0xf] %vm2398, %v2228
      %2486 = vst.msk [vmem:[%s226 + $0x15c] sm:$0xf] %vm2398, %v2229
      %2487 = vst.msk [vmem:[%s226 + $0x160] sm:$0xf] %vm2398, %v2230
      %2488 = vst.msk [vmem:[%s226 + $0x164] sm:$0xf] %vm2398, %v2231
      %2489 = vst.msk [vmem:[%s226 + $0x168] sm:$0xf] %vm2398, %v2232
      %2490 = vst.msk [vmem:[%s226 + $0x16c] sm:$0xf] %vm2398, %v2233
      %2491 = vst.msk [vmem:[%s226 + $0x170] sm:$0xf] %vm2398, %v2234
      %2492 = vst.msk [vmem:[%s226 + $0x174] sm:$0xf] %vm2398, %v2235
      %2493 = vst.msk [vmem:[%s226 + $0x178] sm:$0xf] %vm2398, %v2236
      %2494 = vst.msk [vmem:[%s226 + $0x17c] sm:$0xf] %vm2398, %v2237
      %2495 = vst.msk [vmem:[%s226 + $0x180] sm:$0xf] %vm2398, %v2238
      %2496 = vst.msk [vmem:[%s226 + $0x184] sm:$0xf] %vm2398, %v2239
      %2497 = vst.msk [vmem:[%s226 + $0x188] sm:$0xf] %vm2398, %v2240
      %2498 = vst.msk [vmem:[%s226 + $0x18c] sm:$0xf] %vm2398, %v2241
      %2499 = vst.msk [vmem:[%s226 + $0x190] sm:$0xf] %vm2398, %v2242
      %2500 = vst.msk [vmem:[%s226 + $0x194] sm:$0xf] %vm2398, %v2243
      %2501 = vst.msk [vmem:[%s226 + $0x198] sm:$0xf] %vm2398, %v2244
      %2502 = vst.msk [vmem:[%s226 + $0x19c] sm:$0xf] %vm2398, %v2245
      %2503 = vst.msk [vmem:[%s226 + $0x1a0] sm:$0xf] %vm2398, %v2246
      %2504 = vst.msk [vmem:[%s226 + $0x1a4] sm:$0xf] %vm2398, %v2247
      %2505 = vst.msk [vmem:[%s226 + $0x1a8] sm:$0xf] %vm2398, %v2248
      %2506 = vst.msk [vmem:[%s226 + $0x1ac] sm:$0xf] %vm2398, %v2249
      %2507 = vst.msk [vmem:[%s226 + $0x1b0] sm:$0xf] %vm2398, %v2250
      %2508 = vst.msk [vmem:[%s226 + $0x1b4] sm:$0xf] %vm2398, %v2251
      %2509 = vst.msk [vmem:[%s226 + $0x1b8] sm:$0xf] %vm2398, %v2252
      %2510 = vst.msk [vmem:[%s226 + $0x1bc] sm:$0xf] %vm2398, %v2253
      %2511 = vst.msk [vmem:[%s226 + $0x1c0] sm:$0xf] %vm2398, %v2254
      %2512 = vst.msk [vmem:[%s226 + $0x1c4] sm:$0xf] %vm2398, %v2255
      %2513 = vst.msk [vmem:[%s226 + $0x1c8] sm:$0xf] %vm2398, %v2256
      %2514 = vst.msk [vmem:[%s226 + $0x1cc] sm:$0xf] %vm2398, %v2257
      %2515 = vst.msk [vmem:[%s226 + $0x1d0] sm:$0xf] %vm2398, %v2258
      %2516 = vst.msk [vmem:[%s226 + $0x1d4] sm:$0xf] %vm2398, %v2259
      %2517 = vst.msk [vmem:[%s226 + $0x1d8] sm:$0xf] %vm2398, %v2260
      %2518 = vst.msk [vmem:[%s226 + $0x1dc] sm:$0xf] %vm2398, %v2261
      %2519 = vst.msk [vmem:[%s226 + $0x1e0] sm:$0xf] %vm2398, %v2262
      %2520 = vst.msk [vmem:[%s226 + $0x1e4] sm:$0xf] %vm2398, %v2263
      %2521 = vst.msk [vmem:[%s226 + $0x1e8] sm:$0xf] %vm2398, %v2264
      %2522 = vst.msk [vmem:[%s226 + $0x1ec] sm:$0xf] %vm2398, %v2265
      %2523 = vst.msk [vmem:[%s226 + $0x1f0] sm:$0xf] %vm2398, %v2266
      %2524 = vst.msk [vmem:[%s226 + $0x1f4] sm:$0xf] %vm2398, %v2267
      %2525 = vst.msk [vmem:[%s226 + $0x1f8] sm:$0xf] %vm2398, %v2268
      %2526 = vst.msk [vmem:[%s226 + $0x1fc] sm:$0xf] %vm2398, %v2269
      %s2527 = smul.u32 128, %s18
      %p2528 = scmp.lt.s32.totalorder %s2527, 1023
      %s2529 = scalar_select %p2528, %s2527, 1023
      %p2530 = scmp.lt.s32.totalorder %s19, 0
      %s2531 = scalar_select %p2530, %s19, 0
      %s2532 = sadd.s32 %s2531, %s2529
      %s2533 = smul.addr %s2532, 4
      %s2534 = scalar_lea.vmem %s3, %s2533
      // Predicated region
      $region33: #{tpu_custom_call.1} parent=31 // pred_check
        %p2535 = pneg %p124
      $region34: #{tpu_custom_call.1} parent=31 // pred_check_branch
        %2537 = sbr.rel (%p2535) target = $region36
      $region35: #{tpu_custom_call.1} parent=31 // pred_region
        %s2538 = smul.u32 128, %s18
      $region36: #{tpu_custom_call.1} parent=31 // pred_fallthru
        _
    $region32: #{tpu_custom_call.1} parent=5 // pred_fallthru
      _
    %p2539 = scmp.le.s32.totalorder 2, %s9
    // Predicated region
    $region37: #{tpu_custom_call.1} parent=5 // pred_check
      %p2540 = pneg %p2539
    $region38: #{tpu_custom_call.1} parent=5 // pred_check_branch
      %2542 = sbr.rel (%p2540) target = $region40
    $region39: #{tpu_custom_call.1} parent=5 // pred_region
      %s2543 = ssub.s32 %s9, 2
      // Predicated region
      $region41: #{tpu_custom_call.1} parent=39 // pred_check
        %p2544 = pneg %p130
      $region42: #{tpu_custom_call.1} parent=39 // pred_check_branch
        %2546 = sbr.rel (%p2544) target = $region44
      $region43: #{tpu_custom_call.1} parent=39 // pred_region
        %s2547 = smul.u32 128, %s20
        %p2548 = scmp.lt.s32.totalorder %s2547, 1023
        %s2549 = scalar_select %p2548, %s2547, 1023
        %p2550 = scmp.lt.s32.totalorder %s21, 0
        %s2551 = scalar_select %p2550, %s21, 0
        %s2552 = sadd.s32 %s2551, %s2549
        %s2553 = smul.addr %s2552, 4
        %s2554 = scalar_lea.vmem %s3, %s2553
      $region44: #{tpu_custom_call.1} parent=39 // pred_fallthru
        _
    $region40: #{tpu_custom_call.1} parent=5 // pred_fallthru
      _
  $region6: #{tpu_custom_call.1} parent=0 // loop_footer
    %s13 = sadd.s32 1, %s9
  $region7: #{tpu_custom_call.1} parent=0 // loop_footer_branch
    %8 = sbr.rel target = $region3
  $region8: #{tpu_custom_call.1} parent=0 // loop_exit
    _

</llo_original>
